<compile_context>
chip_gen: v7x
topology: tpu7x:2x2x1
jax: 0.10.0
libtpu: 0.0.40
codegen_flags: <defaults>
</compile_context>

<pallas_src>
import numpy as np
import jax
import jax.numpy as jnp
from jax import lax
from jax.experimental import pallas as pl
from jax.experimental.pallas import tpu as pltpu

EPS = 1e-5  # BatchNorm2d default eps


def _round_up(x, m):
    return (x + m - 1) // m * m


# ----------------------------------------------------------------------------
# Fused kernel: sattn gate + nb x (conv3x3 'same' + folded BN + ReLU)
# ----------------------------------------------------------------------------
def _make_fused_kernel(nb, Cm, Cins, Couts, H, W, P):
    L = H * W
    f32 = jnp.float32

    def kernel(*refs):
        xcd_ref = refs[0]                       # (1, 3*Cm, L) packed [xin;dup;c]
        watt_ref = refs[1]                      # (Cm, Cm)
        batt_ref = refs[2]                      # (Cm, 1) f32
        layer_refs = refs[3:3 + 3 * nb]         # per layer: w_col, scale, shift
        o_ref = refs[3 + 3 * nb]                # (1, Cout_last, L)
        xp_ref = refs[4 + 3 * nb]               # (Cmax, L + 2P) padded scratch

        # Row-wrap masks for the dx = +-1 conv taps: hoisted, computed once
        # per grid step and shared by every layer.
        col = lax.broadcasted_iota(jnp.int32, (1, L), 1) % W
        mask_l = (col >= 1).astype(f32)         # kills x == 0 wrap  (dx = -1)
        mask_r = (col <= W - 2).astype(f32)     # kills x == W-1 wrap (dx = +1)

        # Zero the halo pad columns (only 2*Cmax*P elements, so done every
        # step: with dimension_semantics=('parallel',) the grid may be split
        # across TensorCores on v7x, and a program_id==0 guard would leave
        # the second core's scratch uninitialised).
        nrow = xp_ref.shape[0]
        xp_ref[:, :P] = jnp.zeros((nrow, P), xp_ref.dtype)
        xp_ref[:, P + L:] = jnp.zeros((nrow, P), xp_ref.dtype)

        # --- sattn: sigmoid(1x1 conv(xin)) * upsampled(d), f32 epilogue ------
        xcd = xcd_ref.at[0]
        xin = xcd[0:Cm, :]
        dup = xcd[Cm:2 * Cm, :]
        cc = xcd[2 * Cm:3 * Cm, :]
        logits = jnp.dot(watt_ref[...], xin,
                         preferred_element_type=f32) + batt_ref[...]
        attn = pl.reciprocal(1.0 + jnp.exp(-logits), approx=True)  # EUP sigmoid
        d_att = attn * dup.astype(f32)

        # "concat([c, d_att])" written straight into the padded VMEM buffer.
        xp_ref[0:Cm, P:P + L] = cc
        xp_ref[Cm:2 * Cm, P:P + L] = d_att.astype(xp_ref.dtype)

        # --- conv chain: nb x (3x3 'same' conv + folded BN + ReLU) -----------
        for i in range(nb):
            w_ref, s_ref, t_ref = layer_refs[3 * i:3 * i + 3]
            Cin, Cout = Cins[i], Couts[i]
            w_all = w_ref[...]                  # (Cout, 9*Cin), tap-major

            # Direct per-tap accumulation (no im2col buffer): 9 small MXU
            # matmuls summed in f32; taps grouped by dx so each row-wrap mask
            # is applied once on the (Cout, L) partial sum.
            acc = None
            for dx in (-1, 0, 1):
                part = None
                for dy in (-1, 0, 1):
                    k = (dy + 1) * 3 + (dx + 1)
                    s = dy * W + dx
                    tap = xp_ref[0:Cin, P + s:P + s + L]
                    contrib = jnp.dot(w_all[:, k * Cin:(k + 1) * Cin], tap,
                                      preferred_element_type=f32)
                    part = contrib if part is None else part + contrib
                if dx == -1:
                    part = part * mask_l
                elif dx == 1:
                    part = part * mask_r
                acc = part if acc is None else acc + part

            y = jnp.maximum(acc * s_ref[...] + t_ref[...], 0.0)
            if i + 1 < nb:
                # Inter-layer activation stays resident in VMEM (no HBM trip).
                xp_ref[0:Cout, P:P + L] = y.astype(xp_ref.dtype)
            else:
                o_ref[0] = y.astype(o_ref.dtype)

    return kernel


def upblock_fused_forward(xcd, w_att, b_att, layer_weights, H, W,
                          out_dtype, compute_dtype):
    """xcd: (N, 3*Cm, L) packed [xin ; d_up ; c].  layer_weights: list of
    (w_col (Cout,9*Cin), scale (Cout,1), shift (Cout,1))."""
    N, C3, L = xcd.shape
    Cm = C3 // 3
    nb = len(layer_weights)
    Couts = [w.shape[0] for (w, _, _) in layer_weights]
    Cins = [2 * Cm] + Couts[:-1]
    Cmax = max([2 * Cm] + Couts)
    P = _round_up(W + 1, 128)

    kern = _make_fused_kernel(nb, Cm, Cins, Couts, H, W, P)

    # Per-image VMEM footprint estimate -> vmem_limit with headroom (instead
    # of a hard-coded 64 MiB, which equals v7x's entire physical VMEM).
    cd_b = jnp.dtype(compute_dtype).itemsize
    out_b = jnp.dtype(out_dtype).itemsize
    est = (2 * C3 * L * cd_b                    # packed input, double-buffered
           + 2 * Couts[-1] * L * out_b          # output, double-buffered
           + Cmax * (L + 2 * P) * cd_b          # padded activation scratch
           + 4 * Cmax * L * 4)                  # f32 accumulator working set
    vmem_limit = int(min(100 * 2 ** 20, max(32 * 2 ** 20, 1.3 * est)))

    in_specs = [
        pl.BlockSpec((1, C3, L), lambda n: (n, 0, 0)),
        pl.BlockSpec(w_att.shape, lambda n: (0, 0)),
        pl.BlockSpec(b_att.shape, lambda n: (0, 0)),
    ]
    args = [xcd, w_att, b_att]
    for (w_col, scale, shift) in layer_weights:
        in_specs.append(pl.BlockSpec(w_col.shape, lambda n: (0, 0)))
        in_specs.append(pl.BlockSpec(scale.shape, lambda n: (0, 0)))
        in_specs.append(pl.BlockSpec(shift.shape, lambda n: (0, 0)))
        args.extend([w_col, scale, shift])

    return pl.pallas_call(
        kern,
        out_shape=jax.ShapeDtypeStruct((N, Couts[-1], L), out_dtype),
        grid=(N,),
        in_specs=in_specs,
        out_specs=pl.BlockSpec((1, Couts[-1], L), lambda n: (n, 0, 0)),
        scratch_shapes=[pltpu.VMEM((Cmax, L + 2 * P), compute_dtype)],
        compiler_params=pltpu.CompilerParams(
            dimension_semantics=("parallel",),
            vmem_limit_bytes=vmem_limit),
    )(*args)


# ----------------------------------------------------------------------------
# JAX glue: bilinear 2x upsample, nn.Upsample(scale_factor=2, mode='bilinear')
# (align_corners=False).  Operates on the quarter-resolution tensor only.
# ----------------------------------------------------------------------------
def upsample2x_bilinear_nchw(x):
    def up_axis(x, axis):
        size = x.shape[axis]
        dst = jnp.arange(2 * size, dtype=jnp.float32)
        src = jnp.maximum(dst / 2.0 - 0.25, 0.0)   # half-pixel, clamp < 0
        lo = jnp.floor(src).astype(jnp.int32)
        hi = jnp.minimum(lo + 1, size - 1)
        frac = src - lo.astype(jnp.float32)
        xlo = jnp.take(x, lo, axis=axis)
        xhi = jnp.take(x, hi, axis=axis)
        shp = [1] * x.ndim
        shp[axis] = 2 * size
        frac = frac.reshape(shp)
        return xlo * (1.0 - frac) + xhi * frac
    return up_axis(up_axis(x, 2), 3)


# ----------------------------------------------------------------------------
# Parameter helpers (PyTorch-style layouts: 1x1 conv (O,I), 3x3 conv OIHW)
# ----------------------------------------------------------------------------
def _fold_bn(layer):
    scale = layer["gamma"] / jnp.sqrt(layer["var"] + EPS)
    shift = (layer["b"] - layer["mean"]) * scale + layer["beta"]
    return scale.astype(jnp.float32), shift.astype(jnp.float32)


def _w_col(w):
    """(Cout, Cin, 3, 3) OIHW -> (Cout, 9*Cin), tap-major / channel-minor,
    matching the in-kernel tap ordering k = (dy+1)*3 + (dx+1)."""
    cout, cin = w.shape[0], w.shape[1]
    return jnp.transpose(w, (0, 2, 3, 1)).reshape(cout, 9 * cin)


def init_params(key, in_channels, out_channels, nb_Conv):
    cmid = in_channels // 2
    keys = iter(jax.random.split(key, 2 + 6 * nb_Conv))
    params = {
        "w_att": 0.3 * jax.random.normal(next(keys), (cmid, cmid), jnp.float32),
        "b_att": 0.1 * jax.random.normal(next(keys), (cmid,), jnp.float32),
        "cbn": [],
    }
    cin = in_channels
    for _ in range(nb_Conv):
        layer = {
            "w": 0.2 * jax.random.normal(next(keys), (out_channels, cin, 3, 3),
                                         jnp.float32),
            "b": 0.1 * jax.random.normal(next(keys), (out_channels,), jnp.float32),
            "gamma": 1.0 + 0.1 * jax.random.normal(next(keys), (out_channels,),
                                                   jnp.float32),
            "beta": 0.1 * jax.random.normal(next(keys), (out_channels,), jnp.float32),
            "mean": 0.1 * jax.random.normal(next(keys), (out_channels,), jnp.float32),
            "var": jax.random.uniform(next(keys), (out_channels,), jnp.float32,
                                      0.5, 1.5),
        }
        params["cbn"].append(layer)
        cin = out_channels
    return params


# ----------------------------------------------------------------------------
# UpBlock_attention forward (NCHW in / NCHW out)
# ----------------------------------------------------------------------------
def upblock_attention_forward(params, d, c, xin, compute_dtype=jnp.bfloat16):
    N, Cm, Hd, Wd = d.shape
    H, W = 2 * Hd, 2 * Wd
    L = H * W
    cd = compute_dtype

    d_up = upsample2x_bilinear_nchw(d)          # quarter-resolution glue

    # Pack the three head inputs into one (N, 3*Cm, L) slab: a single DMA
    # chain per grid step and a well-filled bf16 sublane tile (12/16 rows vs
    # three 4-row blocks at 25% utilisation).  The concat fuses with the
    # f32->bf16 cast XLA was performing anyway.
    xcd = jnp.concatenate(
        [xin.reshape(N, Cm, L), d_up.reshape(N, Cm, L), c.reshape(N, Cm, L)],
        axis=1).astype(cd)

    w_att = params["w_att"].astype(cd)
    b_att = params["b_att"].reshape(Cm, 1).astype(jnp.float32)

    layer_weights = []
    for layer in params["cbn"]:
        s, t = _fold_bn(layer)
        cout = layer["w"].shape[0]
        layer_weights.append((_w_col(layer["w"]).astype(cd),
                              s.reshape(cout, 1), t.reshape(cout, 1)))

    x = upblock_fused_forward(xcd, w_att, b_att, layer_weights, H, W,
                              jnp.float32, cd)
    return x.reshape(N, x.shape[1], H, W)


# ----------------------------------------------------------------------------
# Pure-JAX/XLA reference.  `compute_dtype` sets the precision at which the
# conv / matmul operands and inter-layer activations are stored (accumulation
# is always f32), mirroring the Pallas kernel's bf16 data path exactly.
# ----------------------------------------------------------------------------
def reference_forward(params, d, c, xin, compute_dtype=jnp.float32):
    f32 = jnp.float32
    cd = compute_dtype
    d_up = upsample2x_bilinear_nchw(d)
    attn = jax.nn.sigmoid(
        jnp.einsum("oi,nihw->nohw", params["w_att"].astype(cd), xin.astype(cd),
                   preferred_element_type=f32)
        + params["b_att"][None, :, None, None])
    x = jnp.concatenate([c, attn * d_up.astype(cd).astype(f32)], axis=1)
    for layer in params["cbn"]:
        y = lax.conv_general_dilated(
            x.astype(cd), layer["w"].astype(cd), (1, 1), "SAME",
            dimension_numbers=("NCHW", "OIHW", "NCHW"),
            preferred_element_type=f32)
        y = y + layer["b"][None, :, None, None]
        y = ((y - layer["mean"][None, :, None, None])
             / jnp.sqrt(layer["var"][None, :, None, None] + EPS)
             * layer["gamma"][None, :, None, None]
             + layer["beta"][None, :, None, None])
        x = jnp.maximum(y, 0.0)
    return x


if __name__ == "__main__":
    key = jax.random.PRNGKey(0)
    k_d, k_c, k_x, k_p = jax.random.split(key, 4)

    in_channels, out_channels, nb_Conv = 8, 4, 2
    N, H, W = 2, 8, 8                                   # d is pre-upsample
    d = jax.random.normal(k_d, (N, in_channels // 2, H, W), jnp.float32)
    c = jax.random.normal(k_c, (N, in_channels // 2, 2 * H, 2 * W), jnp.float32)
    xin = jax.random.normal(k_x, (N, in_channels // 2, 2 * H, 2 * W), jnp.float32)
    params = init_params(k_p, in_channels, out_channels, nb_Conv)

    fwd = jax.jit(upblock_attention_forward)
    out = jax.block_until_ready(fwd(params, d, c, xin))
    assert out.shape == (N, out_channels, 2 * H, 2 * W)

    # Compare against an XLA reference with matched (bf16 operand / f32 accum)
    # precision so the check isolates kernel correctness from bf16 rounding.
    ref = jax.block_until_ready(
        reference_forward(params, d, c, xin, compute_dtype=jnp.bfloat16))
    np.testing.assert_allclose(np.asarray(out), np.asarray(ref),
                               rtol=2e-2, atol=2e-2)
    print("KERNEL_OK")
</pallas_src>

<mosaic_0001>
module attributes {stable_mosaic.version = 11 : i64} {
  func.func @kernel(%arg0: i32, %arg1: memref<1x12x256xbf16, #tpu.memory_space<vmem>>, %arg2: memref<4x4xbf16, #tpu.memory_space<vmem>>, %arg3: memref<4x1xf32, #tpu.memory_space<vmem>>, %arg4: memref<4x72xbf16, #tpu.memory_space<vmem>>, %arg5: memref<4x1xf32, #tpu.memory_space<vmem>>, %arg6: memref<4x1xf32, #tpu.memory_space<vmem>>, %arg7: memref<4x36xbf16, #tpu.memory_space<vmem>>, %arg8: memref<4x1xf32, #tpu.memory_space<vmem>>, %arg9: memref<4x1xf32, #tpu.memory_space<vmem>>, %arg10: memref<1x4x256xf32, #tpu.memory_space<vmem>>, %arg11: memref<8x512xbf16, #tpu.memory_space<vmem>>) attributes {dimension_semantics = [#tpu.dimension_semantics<parallel>], iteration_bounds = array<i64: 2>, scalar_prefetch = 0 : i64, scratch_operands = 1 : i64, tpu.core_type = #tpu.core_type<tc>, window_params = [{transform_indices = @transform_0, window_bounds = array<i64: 1, 12, 256>}, {pipeline_mode = #tpu.pipeline_mode<synchronous>, transform_indices = @transform_1, window_bounds = array<i64: 4, 4>}, {pipeline_mode = #tpu.pipeline_mode<synchronous>, transform_indices = @transform_2, window_bounds = array<i64: 4, 1>}, {pipeline_mode = #tpu.pipeline_mode<synchronous>, transform_indices = @transform_3, window_bounds = array<i64: 4, 72>}, {pipeline_mode = #tpu.pipeline_mode<synchronous>, transform_indices = @transform_4, window_bounds = array<i64: 4, 1>}, {pipeline_mode = #tpu.pipeline_mode<synchronous>, transform_indices = @transform_5, window_bounds = array<i64: 4, 1>}, {pipeline_mode = #tpu.pipeline_mode<synchronous>, transform_indices = @transform_6, window_bounds = array<i64: 4, 36>}, {pipeline_mode = #tpu.pipeline_mode<synchronous>, transform_indices = @transform_7, window_bounds = array<i64: 4, 1>}, {pipeline_mode = #tpu.pipeline_mode<synchronous>, transform_indices = @transform_8, window_bounds = array<i64: 4, 1>}, {transform_indices = @transform_9, window_bounds = array<i64: 1, 4, 256>}]} {
    %0 = tpu.iota {dimensions = array<i32: 1>} : vector<1x256xi32>
    %c16_i32 = arith.constant 16 : i32
    %c0_i32 = arith.constant 0 : i32
    %1 = arith.cmpi eq, %c16_i32, %c0_i32 : i32
    %c1_i32 = arith.constant 1 : i32
    %2 = arith.select %1, %c1_i32, %c16_i32 : i32
    %3 = vector.broadcast %2 : i32 to vector<1x256xi32>
    %4 = arith.remsi %0, %3 : vector<1x256xi32>
    %c0_i32_0 = arith.constant 0 : i32
    %5 = vector.broadcast %c0_i32_0 : i32 to vector<1x256xi32>
    %6 = arith.cmpi ne, %4, %5 : vector<1x256xi32>
    %c0_i32_1 = arith.constant 0 : i32
    %7 = vector.broadcast %c0_i32_1 : i32 to vector<1x256xi32>
    %8 = arith.cmpi slt, %4, %7 : vector<1x256xi32>
    %c0_i32_2 = arith.constant 0 : i32
    %9 = arith.cmpi slt, %2, %c0_i32_2 : i32
    %10 = vector.broadcast %9 : i1 to vector<1x256xi1>
    %11 = vector.broadcast %10 : vector<1x256xi1> to vector<1x256xi1>
    %12 = arith.xori %8, %11 : vector<1x256xi1>
    %13 = arith.andi %12, %6 : vector<1x256xi1>
    %14 = vector.broadcast %2 : i32 to vector<1x256xi32>
    %15 = arith.addi %4, %14 : vector<1x256xi32>
    %16 = arith.select %13, %15, %4 : vector<1x256xi1>, vector<1x256xi32>
    %c1_i32_3 = arith.constant 1 : i32
    %17 = vector.broadcast %c1_i32_3 : i32 to vector<1x256xi32>
    %18 = arith.cmpi sge, %16, %17 : vector<1x256xi32>
    %19 = arith.extui %18 : vector<1x256xi1> to vector<1x256xi32>
    %20 = arith.sitofp %19 : vector<1x256xi32> to vector<1x256xf32>
    %c14_i32 = arith.constant 14 : i32
    %21 = vector.broadcast %c14_i32 : i32 to vector<1x256xi32>
    %22 = arith.cmpi sle, %16, %21 : vector<1x256xi32>
    %23 = arith.extui %22 : vector<1x256xi1> to vector<1x256xi32>
    %24 = arith.sitofp %23 : vector<1x256xi32> to vector<1x256xf32>
    %cst = arith.constant 0.000000e+00 : bf16
    %25 = vector.broadcast %cst : bf16 to vector<8x128xbf16>
    %c0 = arith.constant 0 : index
    %c0_4 = arith.constant 0 : index
    %26 = vector.load %arg11[%c0, %c0_4] : memref<8x512xbf16, #tpu.memory_space<vmem>>, vector<8x128xbf16>
    tpu.vector_store %arg11[%c0, %c0_4], %25 {strides = array<i32>} : memref<8x512xbf16, #tpu.memory_space<vmem>>, vector<8x128xbf16>,
    %cst_5 = arith.constant 0.000000e+00 : bf16
    %27 = vector.broadcast %cst_5 : bf16 to vector<8x128xbf16>
    %c0_6 = arith.constant 0 : index
    %c384 = arith.constant 384 : index
    %28 = vector.load %arg11[%c0_6, %c384] : memref<8x512xbf16, #tpu.memory_space<vmem>>, vector<8x128xbf16>
    tpu.vector_store %arg11[%c0_6, %c384], %27 {strides = array<i32>} : memref<8x512xbf16, #tpu.memory_space<vmem>>, vector<8x128xbf16>,
    %c0_i32_7 = arith.constant 0 : i32
    %c0_i32_8 = arith.constant 0 : i32
    %c0_i32_9 = arith.constant 0 : i32
    %29 = tpu.memref_slice %arg1[%c0_i32_7, %c0_i32_8, %c0_i32_9] : memref<1x12x256xbf16, #tpu.memory_space<vmem>> -> memref<1x12x256xbf16, #tpu.memory_space<vmem>>
    %30 = tpu.memref_squeeze %29 : memref<1x12x256xbf16, #tpu.memory_space<vmem>> -> memref<12x256xbf16, #tpu.memory_space<vmem>>
    %c0_10 = arith.constant 0 : index
    %c0_11 = arith.constant 0 : index
    %31 = vector.load %30[%c0_10, %c0_11] : memref<12x256xbf16, #tpu.memory_space<vmem>>, vector<4x256xbf16>
    %c0_i32_12 = arith.constant 0 : i32
    %c0_i32_13 = arith.constant 0 : i32
    %c0_i32_14 = arith.constant 0 : i32
    %32 = tpu.memref_slice %arg1[%c0_i32_12, %c0_i32_13, %c0_i32_14] : memref<1x12x256xbf16, #tpu.memory_space<vmem>> -> memref<1x12x256xbf16, #tpu.memory_space<vmem>>
    %33 = tpu.memref_squeeze %32 : memref<1x12x256xbf16, #tpu.memory_space<vmem>> -> memref<12x256xbf16, #tpu.memory_space<vmem>>
    %c4 = arith.constant 4 : index
    %c0_15 = arith.constant 0 : index
    %34 = vector.load %33[%c4, %c0_15] : memref<12x256xbf16, #tpu.memory_space<vmem>>, vector<4x256xbf16>
    %c0_i32_16 = arith.constant 0 : i32
    %c0_i32_17 = arith.constant 0 : i32
    %c0_i32_18 = arith.constant 0 : i32
    %35 = tpu.memref_slice %arg1[%c0_i32_16, %c0_i32_17, %c0_i32_18] : memref<1x12x256xbf16, #tpu.memory_space<vmem>> -> memref<1x12x256xbf16, #tpu.memory_space<vmem>>
    %36 = tpu.memref_squeeze %35 : memref<1x12x256xbf16, #tpu.memory_space<vmem>> -> memref<12x256xbf16, #tpu.memory_space<vmem>>
    %c8 = arith.constant 8 : index
    %c0_19 = arith.constant 0 : index
    %37 = vector.load %36[%c8, %c0_19] : memref<12x256xbf16, #tpu.memory_space<vmem>>, vector<4x256xbf16>
    %c0_20 = arith.constant 0 : index
    %c0_21 = arith.constant 0 : index
    %38 = vector.load %arg2[%c0_20, %c0_21] : memref<4x4xbf16, #tpu.memory_space<vmem>>, vector<4x4xbf16>
    %cst_22 = arith.constant dense<0.000000e+00> : vector<4x256xf32>
    %39 = tpu.matmul %38, %31, %cst_22 {dimension_numbers = #tpu.dot_dimension_numbers<[1], [0], [0], [1], [0, 0, 1, 1], [], []>} : vector<4x4xbf16>, vector<4x256xbf16>, vector<4x256xf32> -> vector<4x256xf32>
    %c0_23 = arith.constant 0 : index
    %c0_24 = arith.constant 0 : index
    %40 = vector.load %arg3[%c0_23, %c0_24] : memref<4x1xf32, #tpu.memory_space<vmem>>, vector<4x1xf32>
    %41 = vector.broadcast %40 : vector<4x1xf32> to vector<4x256xf32>
    %42 = arith.addf %39, %41 : vector<4x256xf32>
    %cst_25 = arith.constant 0.000000e+00 : f32
    %43 = vector.broadcast %cst_25 : f32 to vector<4x256xf32>
    %44 = arith.subf %43, %42 : vector<4x256xf32>
    %45 = math.exp %44 : vector<4x256xf32>
    %cst_26 = arith.constant 1.000000e+00 : f32
    %46 = vector.broadcast %cst_26 : f32 to vector<4x256xf32>
    %47 = arith.addf %46, %45 : vector<4x256xf32>
    %48 = tpu.reciprocal %47 {approx = true} : vector<4x256xf32> -> vector<4x256xf32>
    %49 = arith.extf %34 : vector<4x256xbf16> to vector<4x256xf32>
    %50 = arith.mulf %48, %49 : vector<4x256xf32>
    %c0_27 = arith.constant 0 : index
    %c128 = arith.constant 128 : index
    %51 = vector.load %arg11[%c0_27, %c128] : memref<8x512xbf16, #tpu.memory_space<vmem>>, vector<4x256xbf16>
    tpu.vector_store %arg11[%c0_27, %c128], %37 {strides = array<i32>} : memref<8x512xbf16, #tpu.memory_space<vmem>>, vector<4x256xbf16>,
    %52 = arith.truncf %50 : vector<4x256xf32> to vector<4x256xbf16>
    %c4_28 = arith.constant 4 : index
    %c128_29 = arith.constant 128 : index
    %53 = vector.load %arg11[%c4_28, %c128_29] : memref<8x512xbf16, #tpu.memory_space<vmem>>, vector<4x256xbf16>
    tpu.vector_store %arg11[%c4_28, %c128_29], %52 {strides = array<i32>} : memref<8x512xbf16, #tpu.memory_space<vmem>>, vector<4x256xbf16>,
    %c0_30 = arith.constant 0 : index
    %c0_31 = arith.constant 0 : index
    %54 = vector.load %arg4[%c0_30, %c0_31] : memref<4x72xbf16, #tpu.memory_space<vmem>>, vector<4x72xbf16>
    %c0_32 = arith.constant 0 : index
    %c111 = arith.constant 111 : index
    %55 = vector.load %arg11[%c0_32, %c111] : memref<8x512xbf16, #tpu.memory_space<vmem>>, vector<8x256xbf16>
    %56 = vector.extract_strided_slice %54 {offsets = [0, 0], sizes = [4, 8], strides = [1, 1]} : vector<4x72xbf16> to vector<4x8xbf16>
    %cst_33 = arith.constant dense<0.000000e+00> : vector<4x256xf32>
    %57 = tpu.matmul %56, %55, %cst_33 {dimension_numbers = #tpu.dot_dimension_numbers<[1], [0], [0], [1], [0, 0, 1, 1], [], []>} : vector<4x8xbf16>, vector<8x256xbf16>, vector<4x256xf32> -> vector<4x256xf32>
    %c0_34 = arith.constant 0 : index
    %c127 = arith.constant 127 : index
    %58 = vector.load %arg11[%c0_34, %c127] : memref<8x512xbf16, #tpu.memory_space<vmem>>, vector<8x256xbf16>
    %59 = vector.extract_strided_slice %54 {offsets = [0, 24], sizes = [4, 8], strides = [1, 1]} : vector<4x72xbf16> to vector<4x8xbf16>
    %cst_35 = arith.constant dense<0.000000e+00> : vector<4x256xf32>
    %60 = tpu.matmul %59, %58, %cst_35 {dimension_numbers = #tpu.dot_dimension_numbers<[1], [0], [0], [1], [0, 0, 1, 1], [], []>} : vector<4x8xbf16>, vector<8x256xbf16>, vector<4x256xf32> -> vector<4x256xf32>
    %61 = arith.addf %57, %60 : vector<4x256xf32>
    %c0_36 = arith.constant 0 : index
    %c143 = arith.constant 143 : index
    %62 = vector.load %arg11[%c0_36, %c143] : memref<8x512xbf16, #tpu.memory_space<vmem>>, vector<8x256xbf16>
    %63 = vector.extract_strided_slice %54 {offsets = [0, 48], sizes = [4, 8], strides = [1, 1]} : vector<4x72xbf16> to vector<4x8xbf16>
    %cst_37 = arith.constant dense<0.000000e+00> : vector<4x256xf32>
    %64 = tpu.matmul %63, %62, %cst_37 {dimension_numbers = #tpu.dot_dimension_numbers<[1], [0], [0], [1], [0, 0, 1, 1], [], []>} : vector<4x8xbf16>, vector<8x256xbf16>, vector<4x256xf32> -> vector<4x256xf32>
    %65 = arith.addf %61, %64 : vector<4x256xf32>
    %66 = vector.broadcast %20 : vector<1x256xf32> to vector<4x256xf32>
    %67 = arith.mulf %65, %66 : vector<4x256xf32>
    %c0_38 = arith.constant 0 : index
    %c112 = arith.constant 112 : index
    %68 = vector.load %arg11[%c0_38, %c112] : memref<8x512xbf16, #tpu.memory_space<vmem>>, vector<8x256xbf16>
    %69 = vector.extract_strided_slice %54 {offsets = [0, 8], sizes = [4, 8], strides = [1, 1]} : vector<4x72xbf16> to vector<4x8xbf16>
    %cst_39 = arith.constant dense<0.000000e+00> : vector<4x256xf32>
    %70 = tpu.matmul %69, %68, %cst_39 {dimension_numbers = #tpu.dot_dimension_numbers<[1], [0], [0], [1], [0, 0, 1, 1], [], []>} : vector<4x8xbf16>, vector<8x256xbf16>, vector<4x256xf32> -> vector<4x256xf32>
    %c0_40 = arith.constant 0 : index
    %c128_41 = arith.constant 128 : index
    %71 = vector.load %arg11[%c0_40, %c128_41] : memref<8x512xbf16, #tpu.memory_space<vmem>>, vector<8x256xbf16>
    %72 = vector.extract_strided_slice %54 {offsets = [0, 32], sizes = [4, 8], strides = [1, 1]} : vector<4x72xbf16> to vector<4x8xbf16>
    %cst_42 = arith.constant dense<0.000000e+00> : vector<4x256xf32>
    %73 = tpu.matmul %72, %71, %cst_42 {dimension_numbers = #tpu.dot_dimension_numbers<[1], [0], [0], [1], [0, 0, 1, 1], [], []>} : vector<4x8xbf16>, vector<8x256xbf16>, vector<4x256xf32> -> vector<4x256xf32>
    %74 = arith.addf %70, %73 : vector<4x256xf32>
    %c0_43 = arith.constant 0 : index
    %c144 = arith.constant 144 : index
    %75 = vector.load %arg11[%c0_43, %c144] : memref<8x512xbf16, #tpu.memory_space<vmem>>, vector<8x256xbf16>
    %76 = vector.extract_strided_slice %54 {offsets = [0, 56], sizes = [4, 8], strides = [1, 1]} : vector<4x72xbf16> to vector<4x8xbf16>
    %cst_44 = arith.constant dense<0.000000e+00> : vector<4x256xf32>
    %77 = tpu.matmul %76, %75, %cst_44 {dimension_numbers = #tpu.dot_dimension_numbers<[1], [0], [0], [1], [0, 0, 1, 1], [], []>} : vector<4x8xbf16>, vector<8x256xbf16>, vector<4x256xf32> -> vector<4x256xf32>
    %78 = arith.addf %74, %77 : vector<4x256xf32>
    %79 = arith.addf %67, %78 : vector<4x256xf32>
    %c0_45 = arith.constant 0 : index
    %c113 = arith.constant 113 : index
    %80 = vector.load %arg11[%c0_45, %c113] : memref<8x512xbf16, #tpu.memory_space<vmem>>, vector<8x256xbf16>
    %81 = vector.extract_strided_slice %54 {offsets = [0, 16], sizes = [4, 8], strides = [1, 1]} : vector<4x72xbf16> to vector<4x8xbf16>
    %cst_46 = arith.constant dense<0.000000e+00> : vector<4x256xf32>
    %82 = tpu.matmul %81, %80, %cst_46 {dimension_numbers = #tpu.dot_dimension_numbers<[1], [0], [0], [1], [0, 0, 1, 1], [], []>} : vector<4x8xbf16>, vector<8x256xbf16>, vector<4x256xf32> -> vector<4x256xf32>
    %c0_47 = arith.constant 0 : index
    %c129 = arith.constant 129 : index
    %83 = vector.load %arg11[%c0_47, %c129] : memref<8x512xbf16, #tpu.memory_space<vmem>>, vector<8x256xbf16>
    %84 = vector.extract_strided_slice %54 {offsets = [0, 40], sizes = [4, 8], strides = [1, 1]} : vector<4x72xbf16> to vector<4x8xbf16>
    %cst_48 = arith.constant dense<0.000000e+00> : vector<4x256xf32>
    %85 = tpu.matmul %84, %83, %cst_48 {dimension_numbers = #tpu.dot_dimension_numbers<[1], [0], [0], [1], [0, 0, 1, 1], [], []>} : vector<4x8xbf16>, vector<8x256xbf16>, vector<4x256xf32> -> vector<4x256xf32>
    %86 = arith.addf %82, %85 : vector<4x256xf32>
    %c0_49 = arith.constant 0 : index
    %c145 = arith.constant 145 : index
    %87 = vector.load %arg11[%c0_49, %c145] : memref<8x512xbf16, #tpu.memory_space<vmem>>, vector<8x256xbf16>
    %88 = vector.extract_strided_slice %54 {offsets = [0, 64], sizes = [4, 8], strides = [1, 1]} : vector<4x72xbf16> to vector<4x8xbf16>
    %cst_50 = arith.constant dense<0.000000e+00> : vector<4x256xf32>
    %89 = tpu.matmul %88, %87, %cst_50 {dimension_numbers = #tpu.dot_dimension_numbers<[1], [0], [0], [1], [0, 0, 1, 1], [], []>} : vector<4x8xbf16>, vector<8x256xbf16>, vector<4x256xf32> -> vector<4x256xf32>
    %90 = arith.addf %86, %89 : vector<4x256xf32>
    %91 = vector.broadcast %24 : vector<1x256xf32> to vector<4x256xf32>
    %92 = arith.mulf %90, %91 : vector<4x256xf32>
    %93 = arith.addf %79, %92 : vector<4x256xf32>
    %c0_51 = arith.constant 0 : index
    %c0_52 = arith.constant 0 : index
    %94 = vector.load %arg5[%c0_51, %c0_52] : memref<4x1xf32, #tpu.memory_space<vmem>>, vector<4x1xf32>
    %95 = vector.broadcast %94 : vector<4x1xf32> to vector<4x256xf32>
    %96 = arith.mulf %93, %95 : vector<4x256xf32>
    %c0_53 = arith.constant 0 : index
    %c0_54 = arith.constant 0 : index
    %97 = vector.load %arg6[%c0_53, %c0_54] : memref<4x1xf32, #tpu.memory_space<vmem>>, vector<4x1xf32>
    %98 = vector.broadcast %97 : vector<4x1xf32> to vector<4x256xf32>
    %99 = arith.addf %96, %98 : vector<4x256xf32>
    %cst_55 = arith.constant 0.000000e+00 : f32
    %100 = vector.broadcast %cst_55 : f32 to vector<4x256xf32>
    %101 = arith.maximumf %99, %100 : vector<4x256xf32>
    %102 = arith.truncf %101 : vector<4x256xf32> to vector<4x256xbf16>
    %c0_56 = arith.constant 0 : index
    %c128_57 = arith.constant 128 : index
    %103 = vector.load %arg11[%c0_56, %c128_57] : memref<8x512xbf16, #tpu.memory_space<vmem>>, vector<4x256xbf16>
    tpu.vector_store %arg11[%c0_56, %c128_57], %102 {strides = array<i32>} : memref<8x512xbf16, #tpu.memory_space<vmem>>, vector<4x256xbf16>,
    %c0_58 = arith.constant 0 : index
    %c0_59 = arith.constant 0 : index
    %104 = vector.load %arg7[%c0_58, %c0_59] : memref<4x36xbf16, #tpu.memory_space<vmem>>, vector<4x36xbf16>
    %c0_60 = arith.constant 0 : index
    %c111_61 = arith.constant 111 : index
    %105 = vector.load %arg11[%c0_60, %c111_61] : memref<8x512xbf16, #tpu.memory_space<vmem>>, vector<4x256xbf16>
    %106 = vector.extract_strided_slice %104 {offsets = [0, 0], sizes = [4, 4], strides = [1, 1]} : vector<4x36xbf16> to vector<4x4xbf16>
    %cst_62 = arith.constant dense<0.000000e+00> : vector<4x256xf32>
    %107 = tpu.matmul %106, %105, %cst_62 {dimension_numbers = #tpu.dot_dimension_numbers<[1], [0], [0], [1], [0, 0, 1, 1], [], []>} : vector<4x4xbf16>, vector<4x256xbf16>, vector<4x256xf32> -> vector<4x256xf32>
    %c0_63 = arith.constant 0 : index
    %c127_64 = arith.constant 127 : index
    %108 = vector.load %arg11[%c0_63, %c127_64] : memref<8x512xbf16, #tpu.memory_space<vmem>>, vector<4x256xbf16>
    %109 = vector.extract_strided_slice %104 {offsets = [0, 12], sizes = [4, 4], strides = [1, 1]} : vector<4x36xbf16> to vector<4x4xbf16>
    %cst_65 = arith.constant dense<0.000000e+00> : vector<4x256xf32>
    %110 = tpu.matmul %109, %108, %cst_65 {dimension_numbers = #tpu.dot_dimension_numbers<[1], [0], [0], [1], [0, 0, 1, 1], [], []>} : vector<4x4xbf16>, vector<4x256xbf16>, vector<4x256xf32> -> vector<4x256xf32>
    %111 = arith.addf %107, %110 : vector<4x256xf32>
    %c0_66 = arith.constant 0 : index
    %c143_67 = arith.constant 143 : index
    %112 = vector.load %arg11[%c0_66, %c143_67] : memref<8x512xbf16, #tpu.memory_space<vmem>>, vector<4x256xbf16>
    %113 = vector.extract_strided_slice %104 {offsets = [0, 24], sizes = [4, 4], strides = [1, 1]} : vector<4x36xbf16> to vector<4x4xbf16>
    %cst_68 = arith.constant dense<0.000000e+00> : vector<4x256xf32>
    %114 = tpu.matmul %113, %112, %cst_68 {dimension_numbers = #tpu.dot_dimension_numbers<[1], [0], [0], [1], [0, 0, 1, 1], [], []>} : vector<4x4xbf16>, vector<4x256xbf16>, vector<4x256xf32> -> vector<4x256xf32>
    %115 = arith.addf %111, %114 : vector<4x256xf32>
    %116 = vector.broadcast %20 : vector<1x256xf32> to vector<4x256xf32>
    %117 = arith.mulf %115, %116 : vector<4x256xf32>
    %c0_69 = arith.constant 0 : index
    %c112_70 = arith.constant 112 : index
    %118 = vector.load %arg11[%c0_69, %c112_70] : memref<8x512xbf16, #tpu.memory_space<vmem>>, vector<4x256xbf16>
    %119 = vector.extract_strided_slice %104 {offsets = [0, 4], sizes = [4, 4], strides = [1, 1]} : vector<4x36xbf16> to vector<4x4xbf16>
    %cst_71 = arith.constant dense<0.000000e+00> : vector<4x256xf32>
    %120 = tpu.matmul %119, %118, %cst_71 {dimension_numbers = #tpu.dot_dimension_numbers<[1], [0], [0], [1], [0, 0, 1, 1], [], []>} : vector<4x4xbf16>, vector<4x256xbf16>, vector<4x256xf32> -> vector<4x256xf32>
    %c0_72 = arith.constant 0 : index
    %c128_73 = arith.constant 128 : index
    %121 = vector.load %arg11[%c0_72, %c128_73] : memref<8x512xbf16, #tpu.memory_space<vmem>>, vector<4x256xbf16>
    %122 = vector.extract_strided_slice %104 {offsets = [0, 16], sizes = [4, 4], strides = [1, 1]} : vector<4x36xbf16> to vector<4x4xbf16>
    %cst_74 = arith.constant dense<0.000000e+00> : vector<4x256xf32>
    %123 = tpu.matmul %122, %121, %cst_74 {dimension_numbers = #tpu.dot_dimension_numbers<[1], [0], [0], [1], [0, 0, 1, 1], [], []>} : vector<4x4xbf16>, vector<4x256xbf16>, vector<4x256xf32> -> vector<4x256xf32>
    %124 = arith.addf %120, %123 : vector<4x256xf32>
    %c0_75 = arith.constant 0 : index
    %c144_76 = arith.constant 144 : index
    %125 = vector.load %arg11[%c0_75, %c144_76] : memref<8x512xbf16, #tpu.memory_space<vmem>>, vector<4x256xbf16>
    %126 = vector.extract_strided_slice %104 {offsets = [0, 28], sizes = [4, 4], strides = [1, 1]} : vector<4x36xbf16> to vector<4x4xbf16>
    %cst_77 = arith.constant dense<0.000000e+00> : vector<4x256xf32>
    %127 = tpu.matmul %126, %125, %cst_77 {dimension_numbers = #tpu.dot_dimension_numbers<[1], [0], [0], [1], [0, 0, 1, 1], [], []>} : vector<4x4xbf16>, vector<4x256xbf16>, vector<4x256xf32> -> vector<4x256xf32>
    %128 = arith.addf %124, %127 : vector<4x256xf32>
    %129 = arith.addf %117, %128 : vector<4x256xf32>
    %c0_78 = arith.constant 0 : index
    %c113_79 = arith.constant 113 : index
    %130 = vector.load %arg11[%c0_78, %c113_79] : memref<8x512xbf16, #tpu.memory_space<vmem>>, vector<4x256xbf16>
    %131 = vector.extract_strided_slice %104 {offsets = [0, 8], sizes = [4, 4], strides = [1, 1]} : vector<4x36xbf16> to vector<4x4xbf16>
    %cst_80 = arith.constant dense<0.000000e+00> : vector<4x256xf32>
    %132 = tpu.matmul %131, %130, %cst_80 {dimension_numbers = #tpu.dot_dimension_numbers<[1], [0], [0], [1], [0, 0, 1, 1], [], []>} : vector<4x4xbf16>, vector<4x256xbf16>, vector<4x256xf32> -> vector<4x256xf32>
    %c0_81 = arith.constant 0 : index
    %c129_82 = arith.constant 129 : index
    %133 = vector.load %arg11[%c0_81, %c129_82] : memref<8x512xbf16, #tpu.memory_space<vmem>>, vector<4x256xbf16>
    %134 = vector.extract_strided_slice %104 {offsets = [0, 20], sizes = [4, 4], strides = [1, 1]} : vector<4x36xbf16> to vector<4x4xbf16>
    %cst_83 = arith.constant dense<0.000000e+00> : vector<4x256xf32>
    %135 = tpu.matmul %134, %133, %cst_83 {dimension_numbers = #tpu.dot_dimension_numbers<[1], [0], [0], [1], [0, 0, 1, 1], [], []>} : vector<4x4xbf16>, vector<4x256xbf16>, vector<4x256xf32> -> vector<4x256xf32>
    %136 = arith.addf %132, %135 : vector<4x256xf32>
    %c0_84 = arith.constant 0 : index
    %c145_85 = arith.constant 145 : index
    %137 = vector.load %arg11[%c0_84, %c145_85] : memref<8x512xbf16, #tpu.memory_space<vmem>>, vector<4x256xbf16>
    %138 = vector.extract_strided_slice %104 {offsets = [0, 32], sizes = [4, 4], strides = [1, 1]} : vector<4x36xbf16> to vector<4x4xbf16>
    %cst_86 = arith.constant dense<0.000000e+00> : vector<4x256xf32>
    %139 = tpu.matmul %138, %137, %cst_86 {dimension_numbers = #tpu.dot_dimension_numbers<[1], [0], [0], [1], [0, 0, 1, 1], [], []>} : vector<4x4xbf16>, vector<4x256xbf16>, vector<4x256xf32> -> vector<4x256xf32>
    %140 = arith.addf %136, %139 : vector<4x256xf32>
    %141 = vector.broadcast %24 : vector<1x256xf32> to vector<4x256xf32>
    %142 = arith.mulf %140, %141 : vector<4x256xf32>
    %143 = arith.addf %129, %142 : vector<4x256xf32>
    %c0_87 = arith.constant 0 : index
    %c0_88 = arith.constant 0 : index
    %144 = vector.load %arg8[%c0_87, %c0_88] : memref<4x1xf32, #tpu.memory_space<vmem>>, vector<4x1xf32>
    %145 = vector.broadcast %144 : vector<4x1xf32> to vector<4x256xf32>
    %146 = arith.mulf %143, %145 : vector<4x256xf32>
    %c0_89 = arith.constant 0 : index
    %c0_90 = arith.constant 0 : index
    %147 = vector.load %arg9[%c0_89, %c0_90] : memref<4x1xf32, #tpu.memory_space<vmem>>, vector<4x1xf32>
    %148 = vector.broadcast %147 : vector<4x1xf32> to vector<4x256xf32>
    %149 = arith.addf %146, %148 : vector<4x256xf32>
    %cst_91 = arith.constant 0.000000e+00 : f32
    %150 = vector.broadcast %cst_91 : f32 to vector<4x256xf32>
    %151 = arith.maximumf %149, %150 : vector<4x256xf32>
    %c0_92 = arith.constant 0 : index
    %c0_93 = arith.constant 0 : index
    %c0_94 = arith.constant 0 : index
    %152 = vector.load %arg10[%c0_92, %c0_93, %c0_94] : memref<1x4x256xf32, #tpu.memory_space<vmem>>, vector<1x4x256xf32>
    %153 = vector.shape_cast %152 : vector<1x4x256xf32> to vector<4x256xf32>
    %154 = vector.shape_cast %151 : vector<4x256xf32> to vector<1x4x256xf32>
    tpu.vector_store %arg10[%c0_92, %c0_93, %c0_94], %154 {strides = array<i32>} : memref<1x4x256xf32, #tpu.memory_space<vmem>>, vector<1x4x256xf32>,
    return
  }
  func.func @transform_0(%arg0: i32) -> (i32, i32, i32) {
    %c0_i32 = arith.constant 0 : i32
    %c0_i32_0 = arith.constant 0 : i32
    %c0_i32_1 = arith.constant 0 : i32
    return %arg0, %c0_i32, %c0_i32_0 : i32, i32, i32
  }
  func.func @transform_1(%arg0: i32) -> (i32, i32) {
    %c0_i32 = arith.constant 0 : i32
    %c0_i32_0 = arith.constant 0 : i32
    %c0_i32_1 = arith.constant 0 : i32
    return %c0_i32, %c0_i32_0 : i32, i32
  }
  func.func @transform_2(%arg0: i32) -> (i32, i32) {
    %c0_i32 = arith.constant 0 : i32
    %c0_i32_0 = arith.constant 0 : i32
    %c0_i32_1 = arith.constant 0 : i32
    return %c0_i32, %c0_i32_0 : i32, i32
  }
  func.func @transform_3(%arg0: i32) -> (i32, i32) {
    %c0_i32 = arith.constant 0 : i32
    %c0_i32_0 = arith.constant 0 : i32
    %c0_i32_1 = arith.constant 0 : i32
    return %c0_i32, %c0_i32_0 : i32, i32
  }
  func.func @transform_4(%arg0: i32) -> (i32, i32) {
    %c0_i32 = arith.constant 0 : i32
    %c0_i32_0 = arith.constant 0 : i32
    %c0_i32_1 = arith.constant 0 : i32
    return %c0_i32, %c0_i32_0 : i32, i32
  }
  func.func @transform_5(%arg0: i32) -> (i32, i32) {
    %c0_i32 = arith.constant 0 : i32
    %c0_i32_0 = arith.constant 0 : i32
    %c0_i32_1 = arith.constant 0 : i32
    return %c0_i32, %c0_i32_0 : i32, i32
  }
  func.func @transform_6(%arg0: i32) -> (i32, i32) {
    %c0_i32 = arith.constant 0 : i32
    %c0_i32_0 = arith.constant 0 : i32
    %c0_i32_1 = arith.constant 0 : i32
    return %c0_i32, %c0_i32_0 : i32, i32
  }
  func.func @transform_7(%arg0: i32) -> (i32, i32) {
    %c0_i32 = arith.constant 0 : i32
    %c0_i32_0 = arith.constant 0 : i32
    %c0_i32_1 = arith.constant 0 : i32
    return %c0_i32, %c0_i32_0 : i32, i32
  }
  func.func @transform_8(%arg0: i32) -> (i32, i32) {
    %c0_i32 = arith.constant 0 : i32
    %c0_i32_0 = arith.constant 0 : i32
    %c0_i32_1 = arith.constant 0 : i32
    return %c0_i32, %c0_i32_0 : i32, i32
  }
  func.func @transform_9(%arg0: i32) -> (i32, i32, i32) {
    %c0_i32 = arith.constant 0 : i32
    %c0_i32_0 = arith.constant 0 : i32
    %c0_i32_1 = arith.constant 0 : i32
    return %arg0, %c0_i32, %c0_i32_0 : i32, i32, i32
  }
}

</mosaic_0001>

<llo_original>
// kernel: upblock_attention_forward.1
$region0: #{upblock_attention_forward.1}
  #allocation0 [shape = 'u32[]', space=smem, size = 0x4, offset = 0x4, fixed_abs, tag = 'smem constant byte address 0x4 - core index']
  #allocation1 [shape = 'u32[144,128]{1,0:T(1,128)}', space=vmem, size = 0x12000, scoped, tag = 'internal scratch']
  #allocation2 [shape = 'bf16[8,512]{1,0:T(8,128)(2,1)}', space=vmem, size = 0x2000, scoped, tag = 'scratch operand']
  %s0 = inlined_call_operand.vmem [shape: bf16[2,12,256], index: 0, kind: input, shape index: {}]
  %s1 = inlined_call_operand.vmem [shape: bf16[4,4], index: 1, kind: input, shape index: {}]
  %s2 = inlined_call_operand.vmem [shape: f32[4,1], index: 2, kind: input, shape index: {}]
  %s3 = inlined_call_operand.vmem [shape: bf16[4,72], index: 3, kind: input, shape index: {}]
  %s4 = inlined_call_operand.vmem [shape: f32[4,1], index: 4, kind: input, shape index: {}]
  %s5 = inlined_call_operand.vmem [shape: f32[4,1], index: 5, kind: input, shape index: {}]
  %s6 = inlined_call_operand.vmem [shape: bf16[4,36], index: 6, kind: input, shape index: {}]
  %s7 = inlined_call_operand.vmem [shape: f32[4,1], index: 7, kind: input, shape index: {}]
  %s8 = inlined_call_operand.vmem [shape: f32[4,1], index: 8, kind: input, shape index: {}]
  %s9 = inlined_call_operand.vmem [shape: f32[2,4,256], index: 9, kind: output, shape index: {}]
  %s10 = sld [smem:[#allocation0]]
  $region69: #{upblock_attention_forward.1} parent=0
    _
  %s12 = ssub.s32 1, %s10
  %s13 = scalar_select 0, %s12, %s10
  loop: start=0, step=1, limit=4
  $region2: #{upblock_attention_forward.1} parent=0 // loop_pre_header
    _
  $region3: #{upblock_attention_forward.1} parent=0 // loop_header
    %s15 = sphi 0, %s19
    %p16 = scmp.ge.s32.totalorder %s15, 4
    %s25 = sphi 0, %s27
    %s28 = sphi 0, %s25
    %s29 = sphi 0, %s28
    %s45 = sphi 0, %s29
    %s49 = sphi 0, %s49
    %s51 = sphi 0, %s49
    %s52 = sphi 0, %s51
    %s66 = sphi 0, %s52
    %s70 = sphi 0, %s70
    %s72 = sphi 0, %s70
    %s73 = sphi 0, %s72
    %s87 = sphi 0, %s73
    %s91 = sphi 0, %s91
    %s93 = sphi 0, %s91
    %s94 = sphi 0, %s93
    %s108 = sphi 0, %s94
    %s112 = sphi 0, %s112
    %s114 = sphi 0, %s112
    %s115 = sphi 0, %s114
    %s129 = sphi 0, %s115
    %s133 = sphi 0, %s133
    %s135 = sphi 0, %s133
    %s136 = sphi 0, %s135
    %s150 = sphi 0, %s136
    %s154 = sphi 0, %s154
    %s156 = sphi 0, %s154
    %s157 = sphi 0, %s156
    %s171 = sphi 0, %s157
    %s175 = sphi 0, %s175
    %s177 = sphi 0, %s175
    %s178 = sphi 0, %s177
    %s192 = sphi 0, %s178
    %s196 = sphi 0, %s196
    %s198 = sphi 0, %s196
    %s199 = sphi 0, %s198
    %s213 = sphi 0, %s199
    %s219 = sphi 0, %s221
    %s222 = sphi 0, %s219
    %s223 = sphi 0, %s222
    %s239 = sphi 0, %s223
  $region4: #{upblock_attention_forward.1} parent=0 // loop_header_branch
    %18 = sbr.rel (%p16) target = $region8
  $region5: #{upblock_attention_forward.1} parent=0 // loop_body
    %s20 = ssub.s32 %s15, 1
    %s21 = ssub.s32 %s15, 2
    %s22 = sadd.s32 %s15, 1
    %s23 = ssub.s32 %s15, %s22
    %p24 = scmp.eq.s32.totalorder %s23, 0
    %s26 = sadd.s32 %s25, 1
    %s27 = scalar_select %p24, %s25, %s26
    %p30 = pneg %p24
    %p31 = scmp.eq.s32.totalorder %s15, 1
    %p32 = por %p30, %p31
    %p33 = scmp.ne.s32.totalorder %s25, %s28
    %p34 = scmp.eq.s32.totalorder %s15, 0
    %p35 = por %p33, %p34
    %p36 = scmp.ne.s32.totalorder %s25, %s28
    %p37 = scmp.eq.s32.totalorder %s20, 1
    %p38 = por %p36, %p37
    %p39 = scmp.ne.s32.totalorder %s28, %s29
    %p40 = scmp.eq.s32.totalorder %s20, 0
    %p41 = por %p39, %p40
    %p42 = scmp.ne.s32.totalorder %s28, %s29
    %p43 = scmp.eq.s32.totalorder %s21, 1
    %p44 = por %p42, %p43
    %p46 = scmp.ne.s32.totalorder %s29, %s45
    %p47 = scmp.eq.s32.totalorder %s21, 0
    %p48 = por %p46, %p47
    %s50 = sadd.s32 %s49, 1
    %p53 = scmp.eq.s32.totalorder %s15, 1
    %p54 = scmp.ne.s32.totalorder %s49, %s51
    %p55 = scmp.eq.s32.totalorder %s15, 0
    %p56 = por %p54, %p55
    %p57 = scmp.ne.s32.totalorder %s49, %s51
    %p58 = scmp.eq.s32.totalorder %s20, 1
    %p59 = por %p57, %p58
    %p60 = scmp.ne.s32.totalorder %s51, %s52
    %p61 = scmp.eq.s32.totalorder %s20, 0
    %p62 = por %p60, %p61
    %p63 = scmp.ne.s32.totalorder %s51, %s52
    %p64 = scmp.eq.s32.totalorder %s21, 1
    %p65 = por %p63, %p64
    %p67 = scmp.ne.s32.totalorder %s52, %s66
    %p68 = scmp.eq.s32.totalorder %s21, 0
    %p69 = por %p67, %p68
    %s71 = sadd.s32 %s70, 1
    %p74 = scmp.eq.s32.totalorder %s15, 1
    %p75 = scmp.ne.s32.totalorder %s70, %s72
    %p76 = scmp.eq.s32.totalorder %s15, 0
    %p77 = por %p75, %p76
    %p78 = scmp.ne.s32.totalorder %s70, %s72
    %p79 = scmp.eq.s32.totalorder %s20, 1
    %p80 = por %p78, %p79
    %p81 = scmp.ne.s32.totalorder %s72, %s73
    %p82 = scmp.eq.s32.totalorder %s20, 0
    %p83 = por %p81, %p82
    %p84 = scmp.ne.s32.totalorder %s72, %s73
    %p85 = scmp.eq.s32.totalorder %s21, 1
    %p86 = por %p84, %p85
    %p88 = scmp.ne.s32.totalorder %s73, %s87
    %p89 = scmp.eq.s32.totalorder %s21, 0
    %p90 = por %p88, %p89
    %s92 = sadd.s32 %s91, 1
    %p95 = scmp.eq.s32.totalorder %s15, 1
    %p96 = scmp.ne.s32.totalorder %s91, %s93
    %p97 = scmp.eq.s32.totalorder %s15, 0
    %p98 = por %p96, %p97
    %p99 = scmp.ne.s32.totalorder %s91, %s93
    %p100 = scmp.eq.s32.totalorder %s20, 1
    %p101 = por %p99, %p100
    %p102 = scmp.ne.s32.totalorder %s93, %s94
    %p103 = scmp.eq.s32.totalorder %s20, 0
    %p104 = por %p102, %p103
    %p105 = scmp.ne.s32.totalorder %s93, %s94
    %p106 = scmp.eq.s32.totalorder %s21, 1
    %p107 = por %p105, %p106
    %p109 = scmp.ne.s32.totalorder %s94, %s108
    %p110 = scmp.eq.s32.totalorder %s21, 0
    %p111 = por %p109, %p110
    %s113 = sadd.s32 %s112, 1
    %p116 = scmp.eq.s32.totalorder %s15, 1
    %p117 = scmp.ne.s32.totalorder %s112, %s114
    %p118 = scmp.eq.s32.totalorder %s15, 0
    %p119 = por %p117, %p118
    %p120 = scmp.ne.s32.totalorder %s112, %s114
    %p121 = scmp.eq.s32.totalorder %s20, 1
    %p122 = por %p120, %p121
    %p123 = scmp.ne.s32.totalorder %s114, %s115
    %p124 = scmp.eq.s32.totalorder %s20, 0
    %p125 = por %p123, %p124
    %p126 = scmp.ne.s32.totalorder %s114, %s115
    %p127 = scmp.eq.s32.totalorder %s21, 1
    %p128 = por %p126, %p127
    %p130 = scmp.ne.s32.totalorder %s115, %s129
    %p131 = scmp.eq.s32.totalorder %s21, 0
    %p132 = por %p130, %p131
    %s134 = sadd.s32 %s133, 1
    %p137 = scmp.eq.s32.totalorder %s15, 1
    %p138 = scmp.ne.s32.totalorder %s133, %s135
    %p139 = scmp.eq.s32.totalorder %s15, 0
    %p140 = por %p138, %p139
    %p141 = scmp.ne.s32.totalorder %s133, %s135
    %p142 = scmp.eq.s32.totalorder %s20, 1
    %p143 = por %p141, %p142
    %p144 = scmp.ne.s32.totalorder %s135, %s136
    %p145 = scmp.eq.s32.totalorder %s20, 0
    %p146 = por %p144, %p145
    %p147 = scmp.ne.s32.totalorder %s135, %s136
    %p148 = scmp.eq.s32.totalorder %s21, 1
    %p149 = por %p147, %p148
    %p151 = scmp.ne.s32.totalorder %s136, %s150
    %p152 = scmp.eq.s32.totalorder %s21, 0
    %p153 = por %p151, %p152
    %s155 = sadd.s32 %s154, 1
    %p158 = scmp.eq.s32.totalorder %s15, 1
    %p159 = scmp.ne.s32.totalorder %s154, %s156
    %p160 = scmp.eq.s32.totalorder %s15, 0
    %p161 = por %p159, %p160
    %p162 = scmp.ne.s32.totalorder %s154, %s156
    %p163 = scmp.eq.s32.totalorder %s20, 1
    %p164 = por %p162, %p163
    %p165 = scmp.ne.s32.totalorder %s156, %s157
    %p166 = scmp.eq.s32.totalorder %s20, 0
    %p167 = por %p165, %p166
    %p168 = scmp.ne.s32.totalorder %s156, %s157
    %p169 = scmp.eq.s32.totalorder %s21, 1
    %p170 = por %p168, %p169
    %p172 = scmp.ne.s32.totalorder %s157, %s171
    %p173 = scmp.eq.s32.totalorder %s21, 0
    %p174 = por %p172, %p173
    %s176 = sadd.s32 %s175, 1
    %p179 = scmp.eq.s32.totalorder %s15, 1
    %p180 = scmp.ne.s32.totalorder %s175, %s177
    %p181 = scmp.eq.s32.totalorder %s15, 0
    %p182 = por %p180, %p181
    %p183 = scmp.ne.s32.totalorder %s175, %s177
    %p184 = scmp.eq.s32.totalorder %s20, 1
    %p185 = por %p183, %p184
    %p186 = scmp.ne.s32.totalorder %s177, %s178
    %p187 = scmp.eq.s32.totalorder %s20, 0
    %p188 = por %p186, %p187
    %p189 = scmp.ne.s32.totalorder %s177, %s178
    %p190 = scmp.eq.s32.totalorder %s21, 1
    %p191 = por %p189, %p190
    %p193 = scmp.ne.s32.totalorder %s178, %s192
    %p194 = scmp.eq.s32.totalorder %s21, 0
    %p195 = por %p193, %p194
    %s197 = sadd.s32 %s196, 1
    %p200 = scmp.eq.s32.totalorder %s15, 1
    %p201 = scmp.ne.s32.totalorder %s196, %s198
    %p202 = scmp.eq.s32.totalorder %s15, 0
    %p203 = por %p201, %p202
    %p204 = scmp.ne.s32.totalorder %s196, %s198
    %p205 = scmp.eq.s32.totalorder %s20, 1
    %p206 = por %p204, %p205
    %p207 = scmp.ne.s32.totalorder %s198, %s199
    %p208 = scmp.eq.s32.totalorder %s20, 0
    %p209 = por %p207, %p208
    %p210 = scmp.ne.s32.totalorder %s198, %s199
    %p211 = scmp.eq.s32.totalorder %s21, 1
    %p212 = por %p210, %p211
    %p214 = scmp.ne.s32.totalorder %s199, %s213
    %p215 = scmp.eq.s32.totalorder %s21, 0
    %p216 = por %p214, %p215
    %s217 = ssub.s32 %s15, %s22
    %p218 = scmp.eq.s32.totalorder %s217, 0
    %s220 = sadd.s32 %s219, 1
    %s221 = scalar_select %p218, %s219, %s220
    %p224 = pneg %p218
    %p225 = scmp.eq.s32.totalorder %s15, 1
    %p226 = por %p224, %p225
    %p227 = scmp.ne.s32.totalorder %s219, %s222
    %p228 = scmp.eq.s32.totalorder %s15, 0
    %p229 = por %p227, %p228
    %p230 = scmp.ne.s32.totalorder %s219, %s222
    %p231 = scmp.eq.s32.totalorder %s20, 1
    %p232 = por %p230, %p231
    %p233 = scmp.ne.s32.totalorder %s222, %s223
    %p234 = scmp.eq.s32.totalorder %s20, 0
    %p235 = por %p233, %p234
    %p236 = scmp.ne.s32.totalorder %s222, %s223
    %p237 = scmp.eq.s32.totalorder %s21, 1
    %p238 = por %p236, %p237
    %p240 = scmp.ne.s32.totalorder %s223, %s239
    %p241 = scmp.eq.s32.totalorder %s21, 0
    %p242 = por %p240, %p241
    %p243 = scmp.le.s32.totalorder 1, %s15
    %p244 = scmp.lt.s32.totalorder %s15, 3
    %p245 = pnand %p243, %p244
    %p246 = pneg %p245
    // Predicated region
    $region9: #{upblock_attention_forward.1} parent=5 // pred_check
      _
    $region10: #{upblock_attention_forward.1} parent=5 // pred_check_branch
      %248 = sbr.rel (%p245) target = $region12
    $region11: #{upblock_attention_forward.1} parent=5 // pred_region
      %s249 = ssub.s32 %s15, 1
      // Predicated region
      $region13: #{upblock_attention_forward.1} parent=11 // pred_check
        %p250 = pneg %p62
      $region14: #{upblock_attention_forward.1} parent=11 // pred_check_branch
        %252 = sbr.rel (%p250) target = $region16
      $region15: #{upblock_attention_forward.1} parent=11 // pred_region
        _
      $region16: #{upblock_attention_forward.1} parent=11 // pred_fallthru
        _
      // Predicated region
      $region17: #{upblock_attention_forward.1} parent=11 // pred_check
        %p253 = pneg %p83
      $region18: #{upblock_attention_forward.1} parent=11 // pred_check_branch
        %255 = sbr.rel (%p253) target = $region20
      $region19: #{upblock_attention_forward.1} parent=11 // pred_region
        _
      $region20: #{upblock_attention_forward.1} parent=11 // pred_fallthru
        _
      // Predicated region
      $region21: #{upblock_attention_forward.1} parent=11 // pred_check
        %p256 = pneg %p104
      $region22: #{upblock_attention_forward.1} parent=11 // pred_check_branch
        %258 = sbr.rel (%p256) target = $region24
      $region23: #{upblock_attention_forward.1} parent=11 // pred_region
        _
      $region24: #{upblock_attention_forward.1} parent=11 // pred_fallthru
        _
      // Predicated region
      $region25: #{upblock_attention_forward.1} parent=11 // pred_check
        %p259 = pneg %p125
      $region26: #{upblock_attention_forward.1} parent=11 // pred_check_branch
        %261 = sbr.rel (%p259) target = $region28
      $region27: #{upblock_attention_forward.1} parent=11 // pred_region
        _
      $region28: #{upblock_attention_forward.1} parent=11 // pred_fallthru
        _
      // Predicated region
      $region29: #{upblock_attention_forward.1} parent=11 // pred_check
        %p262 = pneg %p146
      $region30: #{upblock_attention_forward.1} parent=11 // pred_check_branch
        %264 = sbr.rel (%p262) target = $region32
      $region31: #{upblock_attention_forward.1} parent=11 // pred_region
        _
      $region32: #{upblock_attention_forward.1} parent=11 // pred_fallthru
        _
      // Predicated region
      $region33: #{upblock_attention_forward.1} parent=11 // pred_check
        %p265 = pneg %p167
      $region34: #{upblock_attention_forward.1} parent=11 // pred_check_branch
        %267 = sbr.rel (%p265) target = $region36
      $region35: #{upblock_attention_forward.1} parent=11 // pred_region
        _
      $region36: #{upblock_attention_forward.1} parent=11 // pred_fallthru
        _
      // Predicated region
      $region37: #{upblock_attention_forward.1} parent=11 // pred_check
        %p268 = pneg %p188
      $region38: #{upblock_attention_forward.1} parent=11 // pred_check_branch
        %270 = sbr.rel (%p268) target = $region40
      $region39: #{upblock_attention_forward.1} parent=11 // pred_region
        _
      $region40: #{upblock_attention_forward.1} parent=11 // pred_fallthru
        _
      // Predicated region
      $region41: #{upblock_attention_forward.1} parent=11 // pred_check
        %p271 = pneg %p209
      $region42: #{upblock_attention_forward.1} parent=11 // pred_check_branch
        %273 = sbr.rel (%p271) target = $region44
      $region43: #{upblock_attention_forward.1} parent=11 // pred_region
        _
      $region44: #{upblock_attention_forward.1} parent=11 // pred_fallthru
        _
    $region12: #{upblock_attention_forward.1} parent=5 // pred_fallthru
      _
    %p274 = scmp.lt.s32.totalorder %s15, 2
    // Predicated region
    $region45: #{upblock_attention_forward.1} parent=5 // pred_check
      %p275 = pneg %p274
    $region46: #{upblock_attention_forward.1} parent=5 // pred_check_branch
      %277 = sbr.rel (%p275) target = $region48
    $region47: #{upblock_attention_forward.1} parent=5 // pred_region
      // Predicated region
      $region49: #{upblock_attention_forward.1} parent=47 // pred_check
        %p278 = pneg %p35
      $region50: #{upblock_attention_forward.1} parent=47 // pred_check_branch
        %280 = sbr.rel (%p278) target = $region52
      $region51: #{upblock_attention_forward.1} parent=47 // pred_region
        %p281 = scmp.lt.s32.totalorder %s15, 1
        %s282 = scalar_select %p281, %s15, 1
        %s283 = smul.addr %s282, 4
        %s284 = smul.addr %s283, 4
        %s285 = scalar_lea.vmem %s0, %s284
      $region52: #{upblock_attention_forward.1} parent=47 // pred_fallthru
        _
    $region48: #{upblock_attention_forward.1} parent=5 // pred_fallthru
      _
    %p286 = scmp.le.s32.totalorder 1, %s15
    %p287 = scmp.lt.s32.totalorder %s15, 3
    %p288 = pnand %p286, %p287
    %p289 = pneg %p288
    // Predicated region
    $region53: #{upblock_attention_forward.1} parent=5 // pred_check
      _
    $region54: #{upblock_attention_forward.1} parent=5 // pred_check_branch
      %291 = sbr.rel (%p288) target = $region56
    $region55: #{upblock_attention_forward.1} parent=5 // pred_region
      %s292 = ssub.s32 %s15, 1
      %p293 = scmp.lt.s32.totalorder %s20, 1
      %s294 = scalar_select %p293, %s20, 1
      %s295 = smul.addr %s294, 4
      %s296 = smul.addr %s295, 4
      %s297 = scalar_lea.vmem %s0, %s296
      %p298 = pneg %p41
      %p299 = pneg %p38
      %p300 = pneg %p62
      %p301 = pneg %p59
      %p302 = pneg %p83
      %p303 = pneg %p80
      %p304 = pneg %p104
      %p305 = pneg %p101
      %p306 = pneg %p125
      %p307 = pneg %p122
      %p308 = pneg %p146
      %p309 = pneg %p143
      %p310 = pneg %p167
      %p311 = pneg %p164
      %p312 = pneg %p188
      %p313 = pneg %p185
      %p314 = pneg %p209
      %p315 = pneg %p206
      %p316 = pneg %p235
      %p317 = pneg %p232
      %p318 = scmp.lt.s32.totalorder %s20, 1
      %s319 = scalar_select %p318, %s20, 1
      %s320 = smul.addr %s319, 2
      %s321 = smul.addr %s320, 4
      %s322 = scalar_lea.vmem %s9, %s321
      %p323 = scmp.lt.s32.totalorder %s20, 1
      %s324 = scalar_select %p323, %s20, 1
      %s325 = smul.addr %s324, 4
      %s326 = smul.addr %s325, 4
      %s327 = scalar_lea.vmem %s0, %s326
      %p328 = scmp.lt.s32.totalorder %s20, 1
      %s329 = scalar_select %p328, %s20, 1
      %s330 = smul.addr %s329, 2
      %s331 = smul.addr %s330, 4
      %s332 = scalar_lea.vmem %s9, %s331
      %v334 = vlaneseq
      %v335 = vand.u32 %v334, 127
      %v336 = vadd.s32 %v335, 128
      %vm337 = vcmp.lt.s32.totalorder %v335, 0
      %v338 = vsub.s32 0, %v335
      %v339 = vsel %vm337, %v338, %v335
      %v340 = vshrl.u32 %v339, 4
      %v341 = vand.u32 %v339, 15
      %v342 = vsub.s32 0, %v341
      %v343 = vsel %vm337, %v342, %v341
      %vm344 = vcmp.lt.s32.totalorder %v336, 0
      %v345 = vsub.s32 0, %v336
      %v346 = vsel %vm344, %v345, %v336
      %v347 = vshrl.u32 %v346, 4
      %v348 = vand.u32 %v346, 15
      %v349 = vsub.s32 0, %v348
      %v350 = vsel %vm344, %v349, %v348
      %vm351 = vcmp.ne.s32.totalorder %v343, 0
      %vm352 = vcmp.ne.s32.totalorder %v350, 0
      %vm353 = vcmp.lt.s32.totalorder %v343, 0
      %vm354 = vcmp.lt.s32.totalorder %v350, 0
      %vm355 = vmand %vm353, %vm351
      %vm356 = vmand %vm354, %vm352
      %v357 = vadd.s32 %v343, 16
      %v358 = vadd.s32 %v350, 16
      %v359 = vsel %vm355, %v357, %v343
      %v360 = vsel %vm356, %v358, %v350
      %vm361 = vcmp.ge.s32.totalorder %v359, 1
      %vm362 = vcmp.ge.s32.totalorder %v360, 1
      %v363 = vsel %vm361, 1, 0
      %v364 = vsel %vm362, 1, 0
      %v365 = vcvt.s32.f32 %v363
      %v366 = vcvt.s32.f32 %v364
      %vm367 = vcmp.le.s32.totalorder %v359, 14
      %vm368 = vcmp.le.s32.totalorder %v360, 14
      %v369 = vsel %vm367, 1, 0
      %v370 = vsel %vm368, 1, 0
      %v371 = vcvt.s32.f32 %v369
      %v372 = vcvt.s32.f32 %v370
      %373 = vst [vmem:[#allocation2] sm:$0xf] 0
      %374 = vst [vmem:[#allocation2 + $0xc] sm:$0xf] 0
      %v375 = vld [vmem:[%s327] sm:$0x33]
      %v376 = vld [vmem:[%s327] sm:$0xcc]
      %v377 = vld [vmem:[%s327 + $0x8] sm:$0x33]
      %v378 = vld [vmem:[%s1] sm:$0x3]
      %v379 = vld [vmem:[%s2] sm:$0xf]
      %381 = vset.pattern.permute.xlu0 0
      %382 = vperm.xlu0 %381, %v379
      %v383 = vpop.permute.xlu0 %382
      %v386 = vunpack.c.l.b16 %v375
      %v387 = vunpack.c.h.b16 %v375
      %v388 = vpack.c.b16 %v386, %v386
      %v389 = vpack.c.b16 %v387, %v387
      %vm390 = vcmask 31744
      %v392 = vsel %vm390, %v378, 0
      %vm394 = vcmask 1041408
      %v396 = vsel %vm394, %v388, 0
      %v399 = vsel %vm394, %v389, 0
      %401 = vmatprep.subr.bf16.mxu0 %v399
      %402 = vmatpush1.bf16.msra.mxu0 %v396
      %403 = vmatprep.subr.bf16.mxu0 0
      %404 = vmatpush1.bf16.msra.mxu0 0
      %405 = vmatprep.subr.bf16.mxu0 0
      %406 = vmatpush1.bf16.msra.mxu0 0
      %407 = vmatprep.subr.bf16.mxu0 0
      %408 = vmatpush1.bf16.msra.mxu0 0
      %409 = vmatprep.subr.bf16.mxu0 0
      %410 = vmatpush1.bf16.msra.mxu0 0
      %411 = vmatprep.subr.bf16.mxu0 0
      %412 = vmatpush1.bf16.msra.mxu0 0
      %413 = vmatprep.subr.bf16.mxu0 0
      %414 = vmatpush1.bf16.msra.mxu0 0
      %415 = vmatprep.subr.bf16.mxu0 0
      %416 = vmatpush1.bf16.msra.mxu0 0
      %417 = vmatprep.subr.bf16.mxu0 0
      %418 = vmatpush1.bf16.msra.mxu0 0
      %419 = vmatprep.subr.bf16.mxu0 0
      %420 = vmatpush1.bf16.msra.mxu0 0
      %421 = vmatprep.subr.bf16.mxu0 0
      %422 = vmatpush1.bf16.msra.mxu0 0
      %423 = vmatprep.subr.bf16.mxu0 0
      %424 = vmatpush1.bf16.msra.mxu0 0
      %425 = vmatprep.subr.bf16.mxu0 0
      %426 = vmatpush1.bf16.msra.mxu0 0
      %427 = vmatprep.subr.bf16.mxu0 0
      %428 = vmatpush1.bf16.msra.mxu0 0
      %429 = vmatprep.subr.bf16.mxu0 0
      %430 = vmatpush1.bf16.msra.mxu0 0
      %431 = vmatprep.subr.bf16.mxu0 0
      %432 = vmatpush1.bf16.msra.mxu0 0
      %433 = vmatprep.mubr.bf16.mxu0 0
      %434 = vmatmul.mubr.bf16.gmra.mrb[0].mxu0 %v392
      %v435 = vpop.f32.mrb[0].mxu0
      %v436 = vadd.f32 %v383, %v435
      %v437 = vpop.f32.mrb[0].mxu0
      %v438 = vadd.f32 %v383, %v437
      %v439 = vpop.f32.mrb[0].mxu0
      %v440 = vpop.f32.mrb[0].mxu0
      %441 = vdwg.mxu0
      %v442 = vsub.f32 0.0, %v436
      %v443 = vsub.f32 0.0, %v438
      %v444 = vmul.f32 %v442, 1.442695
      %v445 = vpow.pop %v444
      %v446 = vmul.f32 %v443, 1.442695
      %v447 = vpow.pop %v446
      %v448 = vadd.f32 %v445, 1.0
      %v449 = vadd.f32 %v447, 1.0
      %v450 = vrcp.pop %v448
      %v451 = vrcp.pop %v449
      %v452 = vunpack.c.l.bf16 %v376
      %v453 = vunpack.c.h.bf16 %v376
      %v456 = vrot.slane %v452, 4
      %v457 = vrot.slane %v453, 4
      %v460 = vmul.f32 %v450, %v456
      %v461 = vmul.f32 %v451, %v457
      %462 = vst [vmem:[#allocation2 + $0x4] sm:$0x33] %v377
      %v463 = vpack.c.bf16 %v460, %v460
      %v464 = vpack.c.bf16 %v461, %v461
      %v467 = vunpack.c.l.b16 %v463
      %v468 = vunpack.c.l.b16 %v464
      %v469 = vpack.c.b16 %v468, %v467
      %v470 = vrot.slane %v469, 6
      %472 = vst [vmem:[#allocation2 + $0x4] sm:$0xcc] %v470
      %v473 = vld [vmem:[%s3] sm:$0x3]
      %v474 = vld [vmem:[#allocation2] sm:$0xff]
      %v475 = vld [vmem:[#allocation2 + $0x8] sm:$0xf]
      %v478 = vunpack.c.l.s4 1983009808
      %v479 = vunpack.c.0.s8 %v478
      %v480 = vlaneseq
      %v481 = vshrl.u32 %v480, 7
      %v482 = vsub.s32 %v479, %v481
      %v483 = vrot.slane %v473, %v482
      %484 = vrot.lane.b32.xlu0 %v483, 104
      %v485 = vpop.permute.xlu0 %484
      %v488 = vunpack.c.l.b16 %v474
      %v489 = vunpack.c.h.b16 %v474
      %v490 = vunpack.c.l.b16 %v475
      %v491 = vpack.c.b16 %v488, %v488
      %v492 = vpack.c.b16 %v489, %v489
      %v493 = vpack.c.b16 %v490, %v490
      %494 = vrot.lane.b32.xlu0 %v491, 1
      %v495 = vpop.permute.xlu0 %494
      %496 = vrot.lane.b32.xlu0 %v492, 1
      %v497 = vpop.permute.xlu0 %496
      %498 = vrot.lane.b32.xlu0 %v493, 1
      %v499 = vpop.permute.xlu0 %498
      %vm500 = vcmask 7168
      %v501 = vsel %vm500, %v495, %v497
      %v502 = vsel %vm500, %v497, %v499
      %vm503 = vcmask 64512
      %v505 = vsel %vm503, %v485, 0
      %vm507 = vcmask 1043456
      %v509 = vsel %vm507, %v501, 0
      %v512 = vsel %vm507, %v502, 0
      %514 = vmatprep.subr.bf16.mxu0 %v512
      %515 = vmatpush1.bf16.msra.mxu0 %v509
      %516 = vmatprep.subr.bf16.mxu0 0
      %517 = vmatpush1.bf16.msra.mxu0 0
      %518 = vmatprep.subr.bf16.mxu0 0
      %519 = vmatpush1.bf16.msra.mxu0 0
      %520 = vmatprep.subr.bf16.mxu0 0
      %521 = vmatpush1.bf16.msra.mxu0 0
      %522 = vmatprep.subr.bf16.mxu0 0
      %523 = vmatpush1.bf16.msra.mxu0 0
      %524 = vmatprep.subr.bf16.mxu0 0
      %525 = vmatpush1.bf16.msra.mxu0 0
      %526 = vmatprep.subr.bf16.mxu0 0
      %527 = vmatpush1.bf16.msra.mxu0 0
      %528 = vmatprep.subr.bf16.mxu0 0
      %529 = vmatpush1.bf16.msra.mxu0 0
      %530 = vmatprep.subr.bf16.mxu0 0
      %531 = vmatpush1.bf16.msra.mxu0 0
      %532 = vmatprep.subr.bf16.mxu0 0
      %533 = vmatpush1.bf16.msra.mxu0 0
      %534 = vmatprep.subr.bf16.mxu0 0
      %535 = vmatpush1.bf16.msra.mxu0 0
      %536 = vmatprep.subr.bf16.mxu0 0
      %537 = vmatpush1.bf16.msra.mxu0 0
      %538 = vmatprep.subr.bf16.mxu0 0
      %539 = vmatpush1.bf16.msra.mxu0 0
      %540 = vmatprep.subr.bf16.mxu0 0
      %541 = vmatpush1.bf16.msra.mxu0 0
      %542 = vmatprep.subr.bf16.mxu0 0
      %543 = vmatpush1.bf16.msra.mxu0 0
      %544 = vmatprep.subr.bf16.mxu0 0
      %545 = vmatpush1.bf16.msra.mxu0 0
      %546 = vmatprep.mubr.bf16.mxu0 0
      %547 = vmatmul.mubr.bf16.gmra.mrb[0].mxu0 %v505
      %v548 = vpop.f32.mrb[0].mxu0
      %v549 = vadd.f32 0.0, %v548
      %v550 = vpop.f32.mrb[0].mxu0
      %v551 = vadd.f32 0.0, %v550
      %v552 = vpop.f32.mrb[0].mxu0
      %v553 = vpop.f32.mrb[0].mxu0
      %554 = vdwg.mxu0
      %555 = vrot.lane.b32.xlu0 %v491, 17
      %v556 = vpop.permute.xlu0 %555
      %557 = vrot.lane.b32.xlu0 %v492, 17
      %v558 = vpop.permute.xlu0 %557
      %559 = vrot.lane.b32.xlu0 %v493, 17
      %v560 = vpop.permute.xlu0 %559
      %vm561 = vcmask 138240
      %v562 = vsel %vm561, %v556, %v558
      %v563 = vsel %vm561, %v558, %v560
      %v565 = vsel %vm503, %v473, 0
      %v568 = vsel %vm507, %v562, 0
      %v571 = vsel %vm507, %v563, 0
      %573 = vmatprep.subr.bf16.mxu0 %v571
      %574 = vmatpush1.bf16.msra.mxu0 %v568
      %575 = vmatprep.subr.bf16.mxu0 0
      %576 = vmatpush1.bf16.msra.mxu0 0
      %577 = vmatprep.subr.bf16.mxu0 0
      %578 = vmatpush1.bf16.msra.mxu0 0
      %579 = vmatprep.subr.bf16.mxu0 0
      %580 = vmatpush1.bf16.msra.mxu0 0
      %581 = vmatprep.subr.bf16.mxu0 0
      %582 = vmatpush1.bf16.msra.mxu0 0
      %583 = vmatprep.subr.bf16.mxu0 0
      %584 = vmatpush1.bf16.msra.mxu0 0
      %585 = vmatprep.subr.bf16.mxu0 0
      %586 = vmatpush1.bf16.msra.mxu0 0
      %587 = vmatprep.subr.bf16.mxu0 0
      %588 = vmatpush1.bf16.msra.mxu0 0
      %589 = vmatprep.subr.bf16.mxu0 0
      %590 = vmatpush1.bf16.msra.mxu0 0
      %591 = vmatprep.subr.bf16.mxu0 0
      %592 = vmatpush1.bf16.msra.mxu0 0
      %593 = vmatprep.subr.bf16.mxu0 0
      %594 = vmatpush1.bf16.msra.mxu0 0
      %595 = vmatprep.subr.bf16.mxu0 0
      %596 = vmatpush1.bf16.msra.mxu0 0
      %597 = vmatprep.subr.bf16.mxu0 0
      %598 = vmatpush1.bf16.msra.mxu0 0
      %599 = vmatprep.subr.bf16.mxu0 0
      %600 = vmatpush1.bf16.msra.mxu0 0
      %601 = vmatprep.subr.bf16.mxu0 0
      %602 = vmatpush1.bf16.msra.mxu0 0
      %603 = vmatprep.subr.bf16.mxu0 0
      %604 = vmatpush1.bf16.msra.mxu0 0
      %605 = vmatprep.mubr.bf16.mxu0 0
      %606 = vmatmul.mubr.bf16.gmra.mrb[0].mxu0 %v565
      %v607 = vpop.f32.mrb[0].mxu0
      %v608 = vadd.f32 %v549, %v607
      %v609 = vpop.f32.mrb[0].mxu0
      %v610 = vadd.f32 %v551, %v609
      %v611 = vpop.f32.mrb[0].mxu0
      %v612 = vpop.f32.mrb[0].mxu0
      %613 = vdwg.mxu0
      %v614 = vld [vmem:[#allocation2 + $0x4] sm:$0xff]
      %v615 = vld [vmem:[#allocation2 + $0xc] sm:$0xf]
      %616 = vrot.lane.b32.xlu0 %v483, 80
      %v617 = vpop.permute.xlu0 %616
      %v620 = vunpack.c.l.b16 %v614
      %v621 = vunpack.c.h.b16 %v614
      %v622 = vunpack.c.l.b16 %v615
      %v623 = vpack.c.b16 %v620, %v620
      %v624 = vpack.c.b16 %v621, %v621
      %v625 = vpack.c.b16 %v622, %v622
      %626 = vrot.lane.b32.xlu0 %v623, 113
      %v627 = vpop.permute.xlu0 %626
      %628 = vrot.lane.b32.xlu0 %v624, 113
      %v629 = vpop.permute.xlu0 %628
      %630 = vrot.lane.b32.xlu0 %v625, 113
      %v631 = vpop.permute.xlu0 %630
      %vm632 = vcmask 924672
      %v633 = vsel %vm632, %v627, %v629
      %v634 = vsel %vm632, %v629, %v631
      %v636 = vsel %vm503, %v617, 0
      %v639 = vsel %vm507, %v633, 0
      %v642 = vsel %vm507, %v634, 0
      %644 = vmatprep.subr.bf16.mxu0 %v642
      %645 = vmatpush1.bf16.msra.mxu0 %v639
      %646 = vmatprep.subr.bf16.mxu0 0
      %647 = vmatpush1.bf16.msra.mxu0 0
      %648 = vmatprep.subr.bf16.mxu0 0
      %649 = vmatpush1.bf16.msra.mxu0 0
      %650 = vmatprep.subr.bf16.mxu0 0
      %651 = vmatpush1.bf16.msra.mxu0 0
      %652 = vmatprep.subr.bf16.mxu0 0
      %653 = vmatpush1.bf16.msra.mxu0 0
      %654 = vmatprep.subr.bf16.mxu0 0
      %655 = vmatpush1.bf16.msra.mxu0 0
      %656 = vmatprep.subr.bf16.mxu0 0
      %657 = vmatpush1.bf16.msra.mxu0 0
      %658 = vmatprep.subr.bf16.mxu0 0
      %659 = vmatpush1.bf16.msra.mxu0 0
      %660 = vmatprep.subr.bf16.mxu0 0
      %661 = vmatpush1.bf16.msra.mxu0 0
      %662 = vmatprep.subr.bf16.mxu0 0
      %663 = vmatpush1.bf16.msra.mxu0 0
      %664 = vmatprep.subr.bf16.mxu0 0
      %665 = vmatpush1.bf16.msra.mxu0 0
      %666 = vmatprep.subr.bf16.mxu0 0
      %667 = vmatpush1.bf16.msra.mxu0 0
      %668 = vmatprep.subr.bf16.mxu0 0
      %669 = vmatpush1.bf16.msra.mxu0 0
      %670 = vmatprep.subr.bf16.mxu0 0
      %671 = vmatpush1.bf16.msra.mxu0 0
      %672 = vmatprep.subr.bf16.mxu0 0
      %673 = vmatpush1.bf16.msra.mxu0 0
      %674 = vmatprep.subr.bf16.mxu0 0
      %675 = vmatpush1.bf16.msra.mxu0 0
      %676 = vmatprep.mubr.bf16.mxu0 0
      %677 = vmatmul.mubr.bf16.gmra.mrb[0].mxu0 %v636
      %v678 = vpop.f32.mrb[0].mxu0
      %v679 = vadd.f32 0.0, %v678
      %v680 = vpop.f32.mrb[0].mxu0
      %v681 = vadd.f32 0.0, %v680
      %v682 = vpop.f32.mrb[0].mxu0
      %v683 = vpop.f32.mrb[0].mxu0
      %684 = vdwg.mxu0
      %v685 = vadd.f32 %v608, %v679
      %v686 = vadd.f32 %v610, %v681
      %v687 = vmul.f32 %v685, %v365
      %v688 = vmul.f32 %v686, %v366
      %v689 = vld [vmem:[#allocation2] sm:$0xff]
      %v690 = vld [vmem:[#allocation2 + $0x8] sm:$0xf]
      %v691 = vld [vmem:[#allocation2 + $0x4] sm:$0xff]
      %692 = vrot.lane.b32.xlu0 %v483, 96
      %v693 = vpop.permute.xlu0 %692
      %v695 = vunpack.c.l.b16 %v691
      %v696 = vunpack.c.h.b16 %v691
      %v697 = vpack.c.b16 %v695, %v695
      %v698 = vpack.c.b16 %v696, %v696
      %v700 = vsel %vm503, %v693, 0
      %v703 = vsel %vm507, %v697, 0
      %v706 = vsel %vm507, %v698, 0
      %708 = vmatprep.subr.bf16.mxu0 %v706
      %709 = vmatpush1.bf16.msra.mxu0 %v703
      %710 = vmatprep.subr.bf16.mxu0 0
      %711 = vmatpush1.bf16.msra.mxu0 0
      %712 = vmatprep.subr.bf16.mxu0 0
      %713 = vmatpush1.bf16.msra.mxu0 0
      %714 = vmatprep.subr.bf16.mxu0 0
      %715 = vmatpush1.bf16.msra.mxu0 0
      %716 = vmatprep.subr.bf16.mxu0 0
      %717 = vmatpush1.bf16.msra.mxu0 0
      %718 = vmatprep.subr.bf16.mxu0 0
      %719 = vmatpush1.bf16.msra.mxu0 0
      %720 = vmatprep.subr.bf16.mxu0 0
      %721 = vmatpush1.bf16.msra.mxu0 0
      %722 = vmatprep.subr.bf16.mxu0 0
      %723 = vmatpush1.bf16.msra.mxu0 0
      %724 = vmatprep.subr.bf16.mxu0 0
      %725 = vmatpush1.bf16.msra.mxu0 0
      %726 = vmatprep.subr.bf16.mxu0 0
      %727 = vmatpush1.bf16.msra.mxu0 0
      %728 = vmatprep.subr.bf16.mxu0 0
      %729 = vmatpush1.bf16.msra.mxu0 0
      %730 = vmatprep.subr.bf16.mxu0 0
      %731 = vmatpush1.bf16.msra.mxu0 0
      %732 = vmatprep.subr.bf16.mxu0 0
      %733 = vmatpush1.bf16.msra.mxu0 0
      %734 = vmatprep.subr.bf16.mxu0 0
      %735 = vmatpush1.bf16.msra.mxu0 0
      %736 = vmatprep.subr.bf16.mxu0 0
      %737 = vmatpush1.bf16.msra.mxu0 0
      %738 = vmatprep.subr.bf16.mxu0 0
      %739 = vmatpush1.bf16.msra.mxu0 0
      %740 = vmatprep.mubr.bf16.mxu0 0
      %741 = vmatmul.mubr.bf16.gmra.mrb[0].mxu0 %v700
      %v742 = vpop.f32.mrb[0].mxu0
      %v743 = vadd.f32 0.0, %v742
      %v744 = vpop.f32.mrb[0].mxu0
      %v745 = vadd.f32 0.0, %v744
      %v746 = vpop.f32.mrb[0].mxu0
      %v747 = vpop.f32.mrb[0].mxu0
      %748 = vdwg.mxu0
      %749 = vrot.lane.b32.xlu0 %v483, 120
      %v750 = vpop.permute.xlu0 %749
      %v753 = vunpack.c.l.b16 %v689
      %v754 = vunpack.c.h.b16 %v689
      %v755 = vunpack.c.l.b16 %v690
      %v756 = vpack.c.b16 %v753, %v753
      %v757 = vpack.c.b16 %v754, %v754
      %v758 = vpack.c.b16 %v755, %v755
      %759 = vrot.lane.b32.xlu0 %v756, 16
      %v760 = vpop.permute.xlu0 %759
      %761 = vrot.lane.b32.xlu0 %v757, 16
      %v762 = vpop.permute.xlu0 %761
      %763 = vrot.lane.b32.xlu0 %v758, 16
      %v764 = vpop.permute.xlu0 %763
      %vm765 = vcmask 130048
      %v766 = vsel %vm765, %v760, %v762
      %v767 = vsel %vm765, %v762, %v764
      %v769 = vsel %vm503, %v750, 0
      %v772 = vsel %vm507, %v766, 0
      %v775 = vsel %vm507, %v767, 0
      %777 = vmatprep.subr.bf16.mxu0 %v775
      %778 = vmatpush1.bf16.msra.mxu0 %v772
      %779 = vmatprep.subr.bf16.mxu0 0
      %780 = vmatpush1.bf16.msra.mxu0 0
      %781 = vmatprep.subr.bf16.mxu0 0
      %782 = vmatpush1.bf16.msra.mxu0 0
      %783 = vmatprep.subr.bf16.mxu0 0
      %784 = vmatpush1.bf16.msra.mxu0 0
      %785 = vmatprep.subr.bf16.mxu0 0
      %786 = vmatpush1.bf16.msra.mxu0 0
      %787 = vmatprep.subr.bf16.mxu0 0
      %788 = vmatpush1.bf16.msra.mxu0 0
      %789 = vmatprep.subr.bf16.mxu0 0
      %790 = vmatpush1.bf16.msra.mxu0 0
      %791 = vmatprep.subr.bf16.mxu0 0
      %792 = vmatpush1.bf16.msra.mxu0 0
      %793 = vmatprep.subr.bf16.mxu0 0
      %794 = vmatpush1.bf16.msra.mxu0 0
      %795 = vmatprep.subr.bf16.mxu0 0
      %796 = vmatpush1.bf16.msra.mxu0 0
      %797 = vmatprep.subr.bf16.mxu0 0
      %798 = vmatpush1.bf16.msra.mxu0 0
      %799 = vmatprep.subr.bf16.mxu0 0
      %800 = vmatpush1.bf16.msra.mxu0 0
      %801 = vmatprep.subr.bf16.mxu0 0
      %802 = vmatpush1.bf16.msra.mxu0 0
      %803 = vmatprep.subr.bf16.mxu0 0
      %804 = vmatpush1.bf16.msra.mxu0 0
      %805 = vmatprep.subr.bf16.mxu0 0
      %806 = vmatpush1.bf16.msra.mxu0 0
      %807 = vmatprep.subr.bf16.mxu0 0
      %808 = vmatpush1.bf16.msra.mxu0 0
      %809 = vmatprep.mubr.bf16.mxu0 0
      %810 = vmatmul.mubr.bf16.gmra.mrb[0].mxu0 %v769
      %v811 = vpop.f32.mrb[0].mxu0
      %v812 = vadd.f32 %v743, %v811
      %v813 = vpop.f32.mrb[0].mxu0
      %v814 = vadd.f32 %v745, %v813
      %v815 = vpop.f32.mrb[0].mxu0
      %v816 = vpop.f32.mrb[0].mxu0
      %817 = vdwg.mxu0
      %v818 = vld [vmem:[#allocation2 + $0x4] sm:$0xff]
      %v819 = vld [vmem:[#allocation2 + $0xc] sm:$0xf]
      %820 = vrot.lane.b32.xlu0 %v483, 72
      %v821 = vpop.permute.xlu0 %820
      %v824 = vunpack.c.l.b16 %v818
      %v825 = vunpack.c.h.b16 %v818
      %v826 = vunpack.c.l.b16 %v819
      %v827 = vpack.c.b16 %v824, %v824
      %v828 = vpack.c.b16 %v825, %v825
      %v829 = vpack.c.b16 %v826, %v826
      %830 = vrot.lane.b32.xlu0 %v827, 112
      %v831 = vpop.permute.xlu0 %830
      %832 = vrot.lane.b32.xlu0 %v828, 112
      %v833 = vpop.permute.xlu0 %832
      %834 = vrot.lane.b32.xlu0 %v829, 112
      %v835 = vpop.permute.xlu0 %834
      %vm836 = vcmask 916480
      %v837 = vsel %vm836, %v831, %v833
      %v838 = vsel %vm836, %v833, %v835
      %v840 = vsel %vm503, %v821, 0
      %v843 = vsel %vm507, %v837, 0
      %v846 = vsel %vm507, %v838, 0
      %848 = vmatprep.subr.bf16.mxu0 %v846
      %849 = vmatpush1.bf16.msra.mxu0 %v843
      %850 = vmatprep.subr.bf16.mxu0 0
      %851 = vmatpush1.bf16.msra.mxu0 0
      %852 = vmatprep.subr.bf16.mxu0 0
      %853 = vmatpush1.bf16.msra.mxu0 0
      %854 = vmatprep.subr.bf16.mxu0 0
      %855 = vmatpush1.bf16.msra.mxu0 0
      %856 = vmatprep.subr.bf16.mxu0 0
      %857 = vmatpush1.bf16.msra.mxu0 0
      %858 = vmatprep.subr.bf16.mxu0 0
      %859 = vmatpush1.bf16.msra.mxu0 0
      %860 = vmatprep.subr.bf16.mxu0 0
      %861 = vmatpush1.bf16.msra.mxu0 0
      %862 = vmatprep.subr.bf16.mxu0 0
      %863 = vmatpush1.bf16.msra.mxu0 0
      %864 = vmatprep.subr.bf16.mxu0 0
      %865 = vmatpush1.bf16.msra.mxu0 0
      %866 = vmatprep.subr.bf16.mxu0 0
      %867 = vmatpush1.bf16.msra.mxu0 0
      %868 = vmatprep.subr.bf16.mxu0 0
      %869 = vmatpush1.bf16.msra.mxu0 0
      %870 = vmatprep.subr.bf16.mxu0 0
      %871 = vmatpush1.bf16.msra.mxu0 0
      %872 = vmatprep.subr.bf16.mxu0 0
      %873 = vmatpush1.bf16.msra.mxu0 0
      %874 = vmatprep.subr.bf16.mxu0 0
      %875 = vmatpush1.bf16.msra.mxu0 0
      %876 = vmatprep.subr.bf16.mxu0 0
      %877 = vmatpush1.bf16.msra.mxu0 0
      %878 = vmatprep.subr.bf16.mxu0 0
      %879 = vmatpush1.bf16.msra.mxu0 0
      %880 = vmatprep.mubr.bf16.mxu0 0
      %881 = vmatmul.mubr.bf16.gmra.mrb[0].mxu0 %v840
      %v882 = vpop.f32.mrb[0].mxu0
      %v883 = vadd.f32 0.0, %v882
      %v884 = vpop.f32.mrb[0].mxu0
      %v885 = vadd.f32 0.0, %v884
      %v886 = vpop.f32.mrb[0].mxu0
      %v887 = vpop.f32.mrb[0].mxu0
      %888 = vdwg.mxu0
      %v889 = vadd.f32 %v812, %v883
      %v890 = vadd.f32 %v814, %v885
      %v891 = vadd.f32 %v687, %v889
      %v892 = vadd.f32 %v688, %v890
      %v893 = vld [vmem:[#allocation2] sm:$0xff]
      %v894 = vld [vmem:[#allocation2 + $0x8] sm:$0xf]
      %v895 = vld [vmem:[#allocation2 + $0x4] sm:$0xff]
      %v896 = vld [vmem:[#allocation2 + $0xc] sm:$0xf]
      %897 = vrot.lane.b32.xlu0 %v483, 88
      %v898 = vpop.permute.xlu0 %897
      %v901 = vunpack.c.l.b16 %v895
      %v902 = vunpack.c.h.b16 %v895
      %v903 = vunpack.c.l.b16 %v896
      %v904 = vpack.c.b16 %v901, %v901
      %v905 = vpack.c.b16 %v902, %v902
      %v906 = vpack.c.b16 %v903, %v903
      %907 = vrot.lane.b32.xlu0 %v904, 127
      %v908 = vpop.permute.xlu0 %907
      %909 = vrot.lane.b32.xlu0 %v905, 127
      %v910 = vpop.permute.xlu0 %909
      %911 = vrot.lane.b32.xlu0 %v906, 127
      %v912 = vpop.permute.xlu0 %911
      %vm913 = vcmask 1039360
      %v914 = vsel %vm913, %v908, %v910
      %v915 = vsel %vm913, %v910, %v912
      %v917 = vsel %vm503, %v898, 0
      %v920 = vsel %vm507, %v914, 0
      %v923 = vsel %vm507, %v915, 0
      %925 = vmatprep.subr.bf16.mxu0 %v923
      %926 = vmatpush1.bf16.msra.mxu0 %v920
      %927 = vmatprep.subr.bf16.mxu0 0
      %928 = vmatpush1.bf16.msra.mxu0 0
      %929 = vmatprep.subr.bf16.mxu0 0
      %930 = vmatpush1.bf16.msra.mxu0 0
      %931 = vmatprep.subr.bf16.mxu0 0
      %932 = vmatpush1.bf16.msra.mxu0 0
      %933 = vmatprep.subr.bf16.mxu0 0
      %934 = vmatpush1.bf16.msra.mxu0 0
      %935 = vmatprep.subr.bf16.mxu0 0
      %936 = vmatpush1.bf16.msra.mxu0 0
      %937 = vmatprep.subr.bf16.mxu0 0
      %938 = vmatpush1.bf16.msra.mxu0 0
      %939 = vmatprep.subr.bf16.mxu0 0
      %940 = vmatpush1.bf16.msra.mxu0 0
      %941 = vmatprep.subr.bf16.mxu0 0
      %942 = vmatpush1.bf16.msra.mxu0 0
      %943 = vmatprep.subr.bf16.mxu0 0
      %944 = vmatpush1.bf16.msra.mxu0 0
      %945 = vmatprep.subr.bf16.mxu0 0
      %946 = vmatpush1.bf16.msra.mxu0 0
      %947 = vmatprep.subr.bf16.mxu0 0
      %948 = vmatpush1.bf16.msra.mxu0 0
      %949 = vmatprep.subr.bf16.mxu0 0
      %950 = vmatpush1.bf16.msra.mxu0 0
      %951 = vmatprep.subr.bf16.mxu0 0
      %952 = vmatpush1.bf16.msra.mxu0 0
      %953 = vmatprep.subr.bf16.mxu0 0
      %954 = vmatpush1.bf16.msra.mxu0 0
      %955 = vmatprep.subr.bf16.mxu0 0
      %956 = vmatpush1.bf16.msra.mxu0 0
      %957 = vmatprep.mubr.bf16.mxu0 0
      %958 = vmatmul.mubr.bf16.gmra.mrb[0].mxu0 %v917
      %v959 = vpop.f32.mrb[0].mxu0
      %v960 = vadd.f32 0.0, %v959
      %v961 = vpop.f32.mrb[0].mxu0
      %v962 = vadd.f32 0.0, %v961
      %v963 = vpop.f32.mrb[0].mxu0
      %v964 = vpop.f32.mrb[0].mxu0
      %965 = vdwg.mxu0
      %966 = vrot.lane.b32.xlu0 %v483, 112
      %v967 = vpop.permute.xlu0 %966
      %v970 = vunpack.c.l.b16 %v893
      %v971 = vunpack.c.h.b16 %v893
      %v972 = vunpack.c.l.b16 %v894
      %v973 = vpack.c.b16 %v970, %v970
      %v974 = vpack.c.b16 %v971, %v971
      %v975 = vpack.c.b16 %v972, %v972
      %976 = vrot.lane.b32.xlu0 %v973, 15
      %v977 = vpop.permute.xlu0 %976
      %978 = vrot.lane.b32.xlu0 %v974, 15
      %v979 = vpop.permute.xlu0 %978
      %980 = vrot.lane.b32.xlu0 %v975, 15
      %v981 = vpop.permute.xlu0 %980
      %vm982 = vcmask 121856
      %v983 = vsel %vm982, %v977, %v979
      %v984 = vsel %vm982, %v979, %v981
      %v986 = vsel %vm503, %v967, 0
      %v989 = vsel %vm507, %v983, 0
      %v992 = vsel %vm507, %v984, 0
      %994 = vmatprep.subr.bf16.mxu0 %v992
      %995 = vmatpush1.bf16.msra.mxu0 %v989
      %996 = vmatprep.subr.bf16.mxu0 0
      %997 = vmatpush1.bf16.msra.mxu0 0
      %998 = vmatprep.subr.bf16.mxu0 0
      %999 = vmatpush1.bf16.msra.mxu0 0
      %1000 = vmatprep.subr.bf16.mxu0 0
      %1001 = vmatpush1.bf16.msra.mxu0 0
      %1002 = vmatprep.subr.bf16.mxu0 0
      %1003 = vmatpush1.bf16.msra.mxu0 0
      %1004 = vmatprep.subr.bf16.mxu0 0
      %1005 = vmatpush1.bf16.msra.mxu0 0
      %1006 = vmatprep.subr.bf16.mxu0 0
      %1007 = vmatpush1.bf16.msra.mxu0 0
      %1008 = vmatprep.subr.bf16.mxu0 0
      %1009 = vmatpush1.bf16.msra.mxu0 0
      %1010 = vmatprep.subr.bf16.mxu0 0
      %1011 = vmatpush1.bf16.msra.mxu0 0
      %1012 = vmatprep.subr.bf16.mxu0 0
      %1013 = vmatpush1.bf16.msra.mxu0 0
      %1014 = vmatprep.subr.bf16.mxu0 0
      %1015 = vmatpush1.bf16.msra.mxu0 0
      %1016 = vmatprep.subr.bf16.mxu0 0
      %1017 = vmatpush1.bf16.msra.mxu0 0
      %1018 = vmatprep.subr.bf16.mxu0 0
      %1019 = vmatpush1.bf16.msra.mxu0 0
      %1020 = vmatprep.subr.bf16.mxu0 0
      %1021 = vmatpush1.bf16.msra.mxu0 0
      %1022 = vmatprep.subr.bf16.mxu0 0
      %1023 = vmatpush1.bf16.msra.mxu0 0
      %1024 = vmatprep.subr.bf16.mxu0 0
      %1025 = vmatpush1.bf16.msra.mxu0 0
      %1026 = vmatprep.mubr.bf16.mxu0 0
      %1027 = vmatmul.mubr.bf16.gmra.mrb[0].mxu0 %v986
      %v1028 = vpop.f32.mrb[0].mxu0
      %v1029 = vadd.f32 %v960, %v1028
      %v1030 = vpop.f32.mrb[0].mxu0
      %v1031 = vadd.f32 %v962, %v1030
      %v1032 = vpop.f32.mrb[0].mxu0
      %v1033 = vpop.f32.mrb[0].mxu0
      %1034 = vdwg.mxu0
      %v1035 = vld [vmem:[#allocation2 + $0x4] sm:$0xff]
      %v1036 = vld [vmem:[#allocation2 + $0xc] sm:$0xf]
      %1037 = vrot.lane.b32.xlu0 %v483, 64
      %v1038 = vpop.permute.xlu0 %1037
      %v1041 = vunpack.c.l.b16 %v1035
      %v1042 = vunpack.c.h.b16 %v1035
      %v1043 = vunpack.c.l.b16 %v1036
      %v1044 = vpack.c.b16 %v1041, %v1041
      %v1045 = vpack.c.b16 %v1042, %v1042
      %v1046 = vpack.c.b16 %v1043, %v1043
      %1047 = vrot.lane.b32.xlu0 %v1044, 111
      %v1048 = vpop.permute.xlu0 %1047
      %1049 = vrot.lane.b32.xlu0 %v1045, 111
      %v1050 = vpop.permute.xlu0 %1049
      %1051 = vrot.lane.b32.xlu0 %v1046, 111
      %v1052 = vpop.permute.xlu0 %1051
      %vm1053 = vcmask 908288
      %v1054 = vsel %vm1053, %v1048, %v1050
      %v1055 = vsel %vm1053, %v1050, %v1052
      %v1057 = vsel %vm503, %v1038, 0
      %v1060 = vsel %vm507, %v1054, 0
      %v1063 = vsel %vm507, %v1055, 0
      %1065 = vmatprep.subr.bf16.mxu0 %v1063
      %1066 = vmatpush1.bf16.msra.mxu0 %v1060
      %1067 = vmatprep.subr.bf16.mxu0 0
      %1068 = vmatpush1.bf16.msra.mxu0 0
      %1069 = vmatprep.subr.bf16.mxu0 0
      %1070 = vmatpush1.bf16.msra.mxu0 0
      %1071 = vmatprep.subr.bf16.mxu0 0
      %1072 = vmatpush1.bf16.msra.mxu0 0
      %1073 = vmatprep.subr.bf16.mxu0 0
      %1074 = vmatpush1.bf16.msra.mxu0 0
      %1075 = vmatprep.subr.bf16.mxu0 0
      %1076 = vmatpush1.bf16.msra.mxu0 0
      %1077 = vmatprep.subr.bf16.mxu0 0
      %1078 = vmatpush1.bf16.msra.mxu0 0
      %1079 = vmatprep.subr.bf16.mxu0 0
      %1080 = vmatpush1.bf16.msra.mxu0 0
      %1081 = vmatprep.subr.bf16.mxu0 0
      %1082 = vmatpush1.bf16.msra.mxu0 0
      %1083 = vmatprep.subr.bf16.mxu0 0
      %1084 = vmatpush1.bf16.msra.mxu0 0
      %1085 = vmatprep.subr.bf16.mxu0 0
      %1086 = vmatpush1.bf16.msra.mxu0 0
      %1087 = vmatprep.subr.bf16.mxu0 0
      %1088 = vmatpush1.bf16.msra.mxu0 0
      %1089 = vmatprep.subr.bf16.mxu0 0
      %1090 = vmatpush1.bf16.msra.mxu0 0
      %1091 = vmatprep.subr.bf16.mxu0 0
      %1092 = vmatpush1.bf16.msra.mxu0 0
      %1093 = vmatprep.subr.bf16.mxu0 0
      %1094 = vmatpush1.bf16.msra.mxu0 0
      %1095 = vmatprep.subr.bf16.mxu0 0
      %1096 = vmatpush1.bf16.msra.mxu0 0
      %1097 = vmatprep.mubr.bf16.mxu0 0
      %1098 = vmatmul.mubr.bf16.gmra.mrb[0].mxu0 %v1057
      %v1099 = vpop.f32.mrb[0].mxu0
      %v1100 = vadd.f32 0.0, %v1099
      %v1101 = vpop.f32.mrb[0].mxu0
      %v1102 = vadd.f32 0.0, %v1101
      %v1103 = vpop.f32.mrb[0].mxu0
      %v1104 = vpop.f32.mrb[0].mxu0
      %1105 = vdwg.mxu0
      %v1106 = vadd.f32 %v1029, %v1100
      %v1107 = vadd.f32 %v1031, %v1102
      %v1108 = vmul.f32 %v1106, %v371
      %v1109 = vmul.f32 %v1107, %v372
      %v1110 = vadd.f32 %v891, %v1108
      %v1111 = vadd.f32 %v892, %v1109
      %v1112 = vld [vmem:[%s4] sm:$0xf]
      %1114 = vset.pattern.permute.xlu0 0
      %1115 = vperm.xlu0 %1114, %v1112
      %v1116 = vpop.permute.xlu0 %1115
      %v1118 = vmul.f32 %v1110, %v1116
      %v1119 = vmul.f32 %v1111, %v1116
      %v1120 = vld [vmem:[%s5] sm:$0xf]
      %1122 = vset.pattern.permute.xlu0 0
      %1123 = vperm.xlu0 %1122, %v1120
      %v1124 = vpop.permute.xlu0 %1123
      %v1126 = vadd.f32 %v1118, %v1124
      %v1127 = vadd.f32 %v1119, %v1124
      %v1128 = vmax.f32 %v1126, 0.0
      %v1129 = vmax.f32 %v1127, 0.0
      %v1130 = vpack.c.bf16 %v1128, %v1128
      %v1131 = vpack.c.bf16 %v1129, %v1129
      %v1134 = vunpack.c.l.b16 %v1130
      %v1135 = vunpack.c.l.b16 %v1131
      %v1136 = vpack.c.b16 %v1135, %v1134
      %1138 = vst [vmem:[#allocation2 + $0x4] sm:$0x33] %v1136
      %v1139 = vld [vmem:[%s6] sm:$0x3]
      %v1140 = vld [vmem:[#allocation2] sm:$0x33]
      %v1141 = vld [vmem:[#allocation2 + $0x8] sm:$0x3]
      %v1144 = vunpack.c.l.s4 1983009808
      %v1145 = vunpack.c.0.s8 %v1144
      %v1146 = vlaneseq
      %v1147 = vshrl.u32 %v1146, 7
      %v1148 = vsub.s32 %v1145, %v1147
      %v1149 = vrot.slane %v1139, %v1148
      %1150 = vrot.lane.b32.xlu0 %v1149, 116
      %v1151 = vpop.permute.xlu0 %1150
      %v1154 = vunpack.c.l.b16 %v1140
      %v1155 = vunpack.c.h.b16 %v1140
      %v1156 = vunpack.c.l.b16 %v1141
      %v1157 = vpack.c.b16 %v1154, %v1154
      %v1158 = vpack.c.b16 %v1155, %v1155
      %v1159 = vpack.c.b16 %v1156, %v1156
      %1160 = vrot.lane.b32.xlu0 %v1157, 1
      %v1161 = vpop.permute.xlu0 %1160
      %1162 = vrot.lane.b32.xlu0 %v1158, 1
      %v1163 = vpop.permute.xlu0 %1162
      %1164 = vrot.lane.b32.xlu0 %v1159, 1
      %v1165 = vpop.permute.xlu0 %1164
      %v1166 = vsel %vm500, %v1161, %v1163
      %v1167 = vsel %vm500, %v1163, %v1165
      %v1169 = vsel %vm390, %v1151, 0
      %v1172 = vsel %vm394, %v1166, 0
      %v1175 = vsel %vm394, %v1167, 0
      %1177 = vmatprep.subr.bf16.mxu0 %v1175
      %1178 = vmatpush1.bf16.msra.mxu0 %v1172
      %1179 = vmatprep.subr.bf16.mxu0 0
      %1180 = vmatpush1.bf16.msra.mxu0 0
      %1181 = vmatprep.subr.bf16.mxu0 0
      %1182 = vmatpush1.bf16.msra.mxu0 0
      %1183 = vmatprep.subr.bf16.mxu0 0
      %1184 = vmatpush1.bf16.msra.mxu0 0
      %1185 = vmatprep.subr.bf16.mxu0 0
      %1186 = vmatpush1.bf16.msra.mxu0 0
      %1187 = vmatprep.subr.bf16.mxu0 0
      %1188 = vmatpush1.bf16.msra.mxu0 0
      %1189 = vmatprep.subr.bf16.mxu0 0
      %1190 = vmatpush1.bf16.msra.mxu0 0
      %1191 = vmatprep.subr.bf16.mxu0 0
      %1192 = vmatpush1.bf16.msra.mxu0 0
      %1193 = vmatprep.subr.bf16.mxu0 0
      %1194 = vmatpush1.bf16.msra.mxu0 0
      %1195 = vmatprep.subr.bf16.mxu0 0
      %1196 = vmatpush1.bf16.msra.mxu0 0
      %1197 = vmatprep.subr.bf16.mxu0 0
      %1198 = vmatpush1.bf16.msra.mxu0 0
      %1199 = vmatprep.subr.bf16.mxu0 0
      %1200 = vmatpush1.bf16.msra.mxu0 0
      %1201 = vmatprep.subr.bf16.mxu0 0
      %1202 = vmatpush1.bf16.msra.mxu0 0
      %1203 = vmatprep.subr.bf16.mxu0 0
      %1204 = vmatpush1.bf16.msra.mxu0 0
      %1205 = vmatprep.subr.bf16.mxu0 0
      %1206 = vmatpush1.bf16.msra.mxu0 0
      %1207 = vmatprep.subr.bf16.mxu0 0
      %1208 = vmatpush1.bf16.msra.mxu0 0
      %1209 = vmatprep.mubr.bf16.mxu0 0
      %1210 = vmatmul.mubr.bf16.gmra.mrb[0].mxu0 %v1169
      %v1211 = vpop.f32.mrb[0].mxu0
      %v1212 = vadd.f32 0.0, %v1211
      %v1213 = vpop.f32.mrb[0].mxu0
      %v1214 = vadd.f32 0.0, %v1213
      %v1215 = vpop.f32.mrb[0].mxu0
      %v1216 = vpop.f32.mrb[0].mxu0
      %1217 = vdwg.mxu0
      %1218 = vrot.lane.b32.xlu0 %v1157, 17
      %v1219 = vpop.permute.xlu0 %1218
      %1220 = vrot.lane.b32.xlu0 %v1158, 17
      %v1221 = vpop.permute.xlu0 %1220
      %1222 = vrot.lane.b32.xlu0 %v1159, 17
      %v1223 = vpop.permute.xlu0 %1222
      %v1224 = vsel %vm561, %v1219, %v1221
      %v1225 = vsel %vm561, %v1221, %v1223
      %v1227 = vsel %vm390, %v1139, 0
      %v1230 = vsel %vm394, %v1224, 0
      %v1233 = vsel %vm394, %v1225, 0
      %1235 = vmatprep.subr.bf16.mxu0 %v1233
      %1236 = vmatpush1.bf16.msra.mxu0 %v1230
      %1237 = vmatprep.subr.bf16.mxu0 0
      %1238 = vmatpush1.bf16.msra.mxu0 0
      %1239 = vmatprep.subr.bf16.mxu0 0
      %1240 = vmatpush1.bf16.msra.mxu0 0
      %1241 = vmatprep.subr.bf16.mxu0 0
      %1242 = vmatpush1.bf16.msra.mxu0 0
      %1243 = vmatprep.subr.bf16.mxu0 0
      %1244 = vmatpush1.bf16.msra.mxu0 0
      %1245 = vmatprep.subr.bf16.mxu0 0
      %1246 = vmatpush1.bf16.msra.mxu0 0
      %1247 = vmatprep.subr.bf16.mxu0 0
      %1248 = vmatpush1.bf16.msra.mxu0 0
      %1249 = vmatprep.subr.bf16.mxu0 0
      %1250 = vmatpush1.bf16.msra.mxu0 0
      %1251 = vmatprep.subr.bf16.mxu0 0
      %1252 = vmatpush1.bf16.msra.mxu0 0
      %1253 = vmatprep.subr.bf16.mxu0 0
      %1254 = vmatpush1.bf16.msra.mxu0 0
      %1255 = vmatprep.subr.bf16.mxu0 0
      %1256 = vmatpush1.bf16.msra.mxu0 0
      %1257 = vmatprep.subr.bf16.mxu0 0
      %1258 = vmatpush1.bf16.msra.mxu0 0
      %1259 = vmatprep.subr.bf16.mxu0 0
      %1260 = vmatpush1.bf16.msra.mxu0 0
      %1261 = vmatprep.subr.bf16.mxu0 0
      %1262 = vmatpush1.bf16.msra.mxu0 0
      %1263 = vmatprep.subr.bf16.mxu0 0
      %1264 = vmatpush1.bf16.msra.mxu0 0
      %1265 = vmatprep.subr.bf16.mxu0 0
      %1266 = vmatpush1.bf16.msra.mxu0 0
      %1267 = vmatprep.mubr.bf16.mxu0 0
      %1268 = vmatmul.mubr.bf16.gmra.mrb[0].mxu0 %v1227
      %v1269 = vpop.f32.mrb[0].mxu0
      %v1270 = vadd.f32 %v1212, %v1269
      %v1271 = vpop.f32.mrb[0].mxu0
      %v1272 = vadd.f32 %v1214, %v1271
      %v1273 = vpop.f32.mrb[0].mxu0
      %v1274 = vpop.f32.mrb[0].mxu0
      %1275 = vdwg.mxu0
      %v1276 = vld [vmem:[#allocation2 + $0x4] sm:$0x33]
      %v1277 = vld [vmem:[#allocation2 + $0xc] sm:$0x3]
      %1278 = vrot.lane.b32.xlu0 %v1149, 104
      %v1279 = vpop.permute.xlu0 %1278
      %v1282 = vunpack.c.l.b16 %v1276
      %v1283 = vunpack.c.h.b16 %v1276
      %v1284 = vunpack.c.l.b16 %v1277
      %v1285 = vpack.c.b16 %v1282, %v1282
      %v1286 = vpack.c.b16 %v1283, %v1283
      %v1287 = vpack.c.b16 %v1284, %v1284
      %1288 = vrot.lane.b32.xlu0 %v1285, 113
      %v1289 = vpop.permute.xlu0 %1288
      %1290 = vrot.lane.b32.xlu0 %v1286, 113
      %v1291 = vpop.permute.xlu0 %1290
      %1292 = vrot.lane.b32.xlu0 %v1287, 113
      %v1293 = vpop.permute.xlu0 %1292
      %v1294 = vsel %vm632, %v1289, %v1291
      %v1295 = vsel %vm632, %v1291, %v1293
      %v1297 = vsel %vm390, %v1279, 0
      %v1300 = vsel %vm394, %v1294, 0
      %v1303 = vsel %vm394, %v1295, 0
      %1305 = vmatprep.subr.bf16.mxu0 %v1303
      %1306 = vmatpush1.bf16.msra.mxu0 %v1300
      %1307 = vmatprep.subr.bf16.mxu0 0
      %1308 = vmatpush1.bf16.msra.mxu0 0
      %1309 = vmatprep.subr.bf16.mxu0 0
      %1310 = vmatpush1.bf16.msra.mxu0 0
      %1311 = vmatprep.subr.bf16.mxu0 0
      %1312 = vmatpush1.bf16.msra.mxu0 0
      %1313 = vmatprep.subr.bf16.mxu0 0
      %1314 = vmatpush1.bf16.msra.mxu0 0
      %1315 = vmatprep.subr.bf16.mxu0 0
      %1316 = vmatpush1.bf16.msra.mxu0 0
      %1317 = vmatprep.subr.bf16.mxu0 0
      %1318 = vmatpush1.bf16.msra.mxu0 0
      %1319 = vmatprep.subr.bf16.mxu0 0
      %1320 = vmatpush1.bf16.msra.mxu0 0
      %1321 = vmatprep.subr.bf16.mxu0 0
      %1322 = vmatpush1.bf16.msra.mxu0 0
      %1323 = vmatprep.subr.bf16.mxu0 0
      %1324 = vmatpush1.bf16.msra.mxu0 0
      %1325 = vmatprep.subr.bf16.mxu0 0
      %1326 = vmatpush1.bf16.msra.mxu0 0
      %1327 = vmatprep.subr.bf16.mxu0 0
      %1328 = vmatpush1.bf16.msra.mxu0 0
      %1329 = vmatprep.subr.bf16.mxu0 0
      %1330 = vmatpush1.bf16.msra.mxu0 0
      %1331 = vmatprep.subr.bf16.mxu0 0
      %1332 = vmatpush1.bf16.msra.mxu0 0
      %1333 = vmatprep.subr.bf16.mxu0 0
      %1334 = vmatpush1.bf16.msra.mxu0 0
      %1335 = vmatprep.subr.bf16.mxu0 0
      %1336 = vmatpush1.bf16.msra.mxu0 0
      %1337 = vmatprep.mubr.bf16.mxu0 0
      %1338 = vmatmul.mubr.bf16.gmra.mrb[0].mxu0 %v1297
      %v1339 = vpop.f32.mrb[0].mxu0
      %v1340 = vadd.f32 0.0, %v1339
      %v1341 = vpop.f32.mrb[0].mxu0
      %v1342 = vadd.f32 0.0, %v1341
      %v1343 = vpop.f32.mrb[0].mxu0
      %v1344 = vpop.f32.mrb[0].mxu0
      %1345 = vdwg.mxu0
      %v1346 = vadd.f32 %v1270, %v1340
      %v1347 = vadd.f32 %v1272, %v1342
      %v1348 = vmul.f32 %v1346, %v365
      %v1349 = vmul.f32 %v1347, %v366
      %v1350 = vld [vmem:[#allocation2] sm:$0x33]
      %v1351 = vld [vmem:[#allocation2 + $0x8] sm:$0x3]
      %v1352 = vld [vmem:[#allocation2 + $0x4] sm:$0x33]
      %1353 = vrot.lane.b32.xlu0 %v1149, 112
      %v1354 = vpop.permute.xlu0 %1353
      %v1356 = vunpack.c.l.b16 %v1352
      %v1357 = vunpack.c.h.b16 %v1352
      %v1358 = vpack.c.b16 %v1356, %v1356
      %v1359 = vpack.c.b16 %v1357, %v1357
      %v1361 = vsel %vm390, %v1354, 0
      %v1364 = vsel %vm394, %v1358, 0
      %v1367 = vsel %vm394, %v1359, 0
      %1369 = vmatprep.subr.bf16.mxu0 %v1367
      %1370 = vmatpush1.bf16.msra.mxu0 %v1364
      %1371 = vmatprep.subr.bf16.mxu0 0
      %1372 = vmatpush1.bf16.msra.mxu0 0
      %1373 = vmatprep.subr.bf16.mxu0 0
      %1374 = vmatpush1.bf16.msra.mxu0 0
      %1375 = vmatprep.subr.bf16.mxu0 0
      %1376 = vmatpush1.bf16.msra.mxu0 0
      %1377 = vmatprep.subr.bf16.mxu0 0
      %1378 = vmatpush1.bf16.msra.mxu0 0
      %1379 = vmatprep.subr.bf16.mxu0 0
      %1380 = vmatpush1.bf16.msra.mxu0 0
      %1381 = vmatprep.subr.bf16.mxu0 0
      %1382 = vmatpush1.bf16.msra.mxu0 0
      %1383 = vmatprep.subr.bf16.mxu0 0
      %1384 = vmatpush1.bf16.msra.mxu0 0
      %1385 = vmatprep.subr.bf16.mxu0 0
      %1386 = vmatpush1.bf16.msra.mxu0 0
      %1387 = vmatprep.subr.bf16.mxu0 0
      %1388 = vmatpush1.bf16.msra.mxu0 0
      %1389 = vmatprep.subr.bf16.mxu0 0
      %1390 = vmatpush1.bf16.msra.mxu0 0
      %1391 = vmatprep.subr.bf16.mxu0 0
      %1392 = vmatpush1.bf16.msra.mxu0 0
      %1393 = vmatprep.subr.bf16.mxu0 0
      %1394 = vmatpush1.bf16.msra.mxu0 0
      %1395 = vmatprep.subr.bf16.mxu0 0
      %1396 = vmatpush1.bf16.msra.mxu0 0
      %1397 = vmatprep.subr.bf16.mxu0 0
      %1398 = vmatpush1.bf16.msra.mxu0 0
      %1399 = vmatprep.subr.bf16.mxu0 0
      %1400 = vmatpush1.bf16.msra.mxu0 0
      %1401 = vmatprep.mubr.bf16.mxu0 0
      %1402 = vmatmul.mubr.bf16.gmra.mrb[0].mxu0 %v1361
      %v1403 = vpop.f32.mrb[0].mxu0
      %v1404 = vadd.f32 0.0, %v1403
      %v1405 = vpop.f32.mrb[0].mxu0
      %v1406 = vadd.f32 0.0, %v1405
      %v1407 = vpop.f32.mrb[0].mxu0
      %v1408 = vpop.f32.mrb[0].mxu0
      %1409 = vdwg.mxu0
      %1410 = vrot.lane.b32.xlu0 %v1149, 124
      %v1411 = vpop.permute.xlu0 %1410
      %v1414 = vunpack.c.l.b16 %v1350
      %v1415 = vunpack.c.h.b16 %v1350
      %v1416 = vunpack.c.l.b16 %v1351
      %v1417 = vpack.c.b16 %v1414, %v1414
      %v1418 = vpack.c.b16 %v1415, %v1415
      %v1419 = vpack.c.b16 %v1416, %v1416
      %1420 = vrot.lane.b32.xlu0 %v1417, 16
      %v1421 = vpop.permute.xlu0 %1420
      %1422 = vrot.lane.b32.xlu0 %v1418, 16
      %v1423 = vpop.permute.xlu0 %1422
      %1424 = vrot.lane.b32.xlu0 %v1419, 16
      %v1425 = vpop.permute.xlu0 %1424
      %v1426 = vsel %vm765, %v1421, %v1423
      %v1427 = vsel %vm765, %v1423, %v1425
      %v1429 = vsel %vm390, %v1411, 0
      %v1432 = vsel %vm394, %v1426, 0
      %v1435 = vsel %vm394, %v1427, 0
      %1437 = vmatprep.subr.bf16.mxu0 %v1435
      %1438 = vmatpush1.bf16.msra.mxu0 %v1432
      %1439 = vmatprep.subr.bf16.mxu0 0
      %1440 = vmatpush1.bf16.msra.mxu0 0
      %1441 = vmatprep.subr.bf16.mxu0 0
      %1442 = vmatpush1.bf16.msra.mxu0 0
      %1443 = vmatprep.subr.bf16.mxu0 0
      %1444 = vmatpush1.bf16.msra.mxu0 0
      %1445 = vmatprep.subr.bf16.mxu0 0
      %1446 = vmatpush1.bf16.msra.mxu0 0
      %1447 = vmatprep.subr.bf16.mxu0 0
      %1448 = vmatpush1.bf16.msra.mxu0 0
      %1449 = vmatprep.subr.bf16.mxu0 0
      %1450 = vmatpush1.bf16.msra.mxu0 0
      %1451 = vmatprep.subr.bf16.mxu0 0
      %1452 = vmatpush1.bf16.msra.mxu0 0
      %1453 = vmatprep.subr.bf16.mxu0 0
      %1454 = vmatpush1.bf16.msra.mxu0 0
      %1455 = vmatprep.subr.bf16.mxu0 0
      %1456 = vmatpush1.bf16.msra.mxu0 0
      %1457 = vmatprep.subr.bf16.mxu0 0
      %1458 = vmatpush1.bf16.msra.mxu0 0
      %1459 = vmatprep.subr.bf16.mxu0 0
      %1460 = vmatpush1.bf16.msra.mxu0 0
      %1461 = vmatprep.subr.bf16.mxu0 0
      %1462 = vmatpush1.bf16.msra.mxu0 0
      %1463 = vmatprep.subr.bf16.mxu0 0
      %1464 = vmatpush1.bf16.msra.mxu0 0
      %1465 = vmatprep.subr.bf16.mxu0 0
      %1466 = vmatpush1.bf16.msra.mxu0 0
      %1467 = vmatprep.subr.bf16.mxu0 0
      %1468 = vmatpush1.bf16.msra.mxu0 0
      %1469 = vmatprep.mubr.bf16.mxu0 0
      %1470 = vmatmul.mubr.bf16.gmra.mrb[0].mxu0 %v1429
      %v1471 = vpop.f32.mrb[0].mxu0
      %v1472 = vadd.f32 %v1404, %v1471
      %v1473 = vpop.f32.mrb[0].mxu0
      %v1474 = vadd.f32 %v1406, %v1473
      %v1475 = vpop.f32.mrb[0].mxu0
      %v1476 = vpop.f32.mrb[0].mxu0
      %1477 = vdwg.mxu0
      %v1478 = vld [vmem:[#allocation2 + $0x4] sm:$0x33]
      %v1479 = vld [vmem:[#allocation2 + $0xc] sm:$0x3]
      %1480 = vrot.lane.b32.xlu0 %v1149, 100
      %v1481 = vpop.permute.xlu0 %1480
      %v1484 = vunpack.c.l.b16 %v1478
      %v1485 = vunpack.c.h.b16 %v1478
      %v1486 = vunpack.c.l.b16 %v1479
      %v1487 = vpack.c.b16 %v1484, %v1484
      %v1488 = vpack.c.b16 %v1485, %v1485
      %v1489 = vpack.c.b16 %v1486, %v1486
      %1490 = vrot.lane.b32.xlu0 %v1487, 112
      %v1491 = vpop.permute.xlu0 %1490
      %1492 = vrot.lane.b32.xlu0 %v1488, 112
      %v1493 = vpop.permute.xlu0 %1492
      %1494 = vrot.lane.b32.xlu0 %v1489, 112
      %v1495 = vpop.permute.xlu0 %1494
      %v1496 = vsel %vm836, %v1491, %v1493
      %v1497 = vsel %vm836, %v1493, %v1495
      %v1499 = vsel %vm390, %v1481, 0
      %v1502 = vsel %vm394, %v1496, 0
      %v1505 = vsel %vm394, %v1497, 0
      %1507 = vmatprep.subr.bf16.mxu0 %v1505
      %1508 = vmatpush1.bf16.msra.mxu0 %v1502
      %1509 = vmatprep.subr.bf16.mxu0 0
      %1510 = vmatpush1.bf16.msra.mxu0 0
      %1511 = vmatprep.subr.bf16.mxu0 0
      %1512 = vmatpush1.bf16.msra.mxu0 0
      %1513 = vmatprep.subr.bf16.mxu0 0
      %1514 = vmatpush1.bf16.msra.mxu0 0
      %1515 = vmatprep.subr.bf16.mxu0 0
      %1516 = vmatpush1.bf16.msra.mxu0 0
      %1517 = vmatprep.subr.bf16.mxu0 0
      %1518 = vmatpush1.bf16.msra.mxu0 0
      %1519 = vmatprep.subr.bf16.mxu0 0
      %1520 = vmatpush1.bf16.msra.mxu0 0
      %1521 = vmatprep.subr.bf16.mxu0 0
      %1522 = vmatpush1.bf16.msra.mxu0 0
      %1523 = vmatprep.subr.bf16.mxu0 0
      %1524 = vmatpush1.bf16.msra.mxu0 0
      %1525 = vmatprep.subr.bf16.mxu0 0
      %1526 = vmatpush1.bf16.msra.mxu0 0
      %1527 = vmatprep.subr.bf16.mxu0 0
      %1528 = vmatpush1.bf16.msra.mxu0 0
      %1529 = vmatprep.subr.bf16.mxu0 0
      %1530 = vmatpush1.bf16.msra.mxu0 0
      %1531 = vmatprep.subr.bf16.mxu0 0
      %1532 = vmatpush1.bf16.msra.mxu0 0
      %1533 = vmatprep.subr.bf16.mxu0 0
      %1534 = vmatpush1.bf16.msra.mxu0 0
      %1535 = vmatprep.subr.bf16.mxu0 0
      %1536 = vmatpush1.bf16.msra.mxu0 0
      %1537 = vmatprep.subr.bf16.mxu0 0
      %1538 = vmatpush1.bf16.msra.mxu0 0
      %1539 = vmatprep.mubr.bf16.mxu0 0
      %1540 = vmatmul.mubr.bf16.gmra.mrb[0].mxu0 %v1499
      %v1541 = vpop.f32.mrb[0].mxu0
      %v1542 = vadd.f32 0.0, %v1541
      %v1543 = vpop.f32.mrb[0].mxu0
      %v1544 = vadd.f32 0.0, %v1543
      %v1545 = vpop.f32.mrb[0].mxu0
      %v1546 = vpop.f32.mrb[0].mxu0
      %1547 = vdwg.mxu0
      %v1548 = vadd.f32 %v1472, %v1542
      %v1549 = vadd.f32 %v1474, %v1544
      %v1550 = vadd.f32 %v1348, %v1548
      %v1551 = vadd.f32 %v1349, %v1549
      %v1552 = vld [vmem:[#allocation2] sm:$0x33]
      %v1553 = vld [vmem:[#allocation2 + $0x8] sm:$0x3]
      %v1554 = vld [vmem:[#allocation2 + $0x4] sm:$0x33]
      %v1555 = vld [vmem:[#allocation2 + $0xc] sm:$0x3]
      %1556 = vrot.lane.b32.xlu0 %v1149, 108
      %v1557 = vpop.permute.xlu0 %1556
      %v1560 = vunpack.c.l.b16 %v1554
      %v1561 = vunpack.c.h.b16 %v1554
      %v1562 = vunpack.c.l.b16 %v1555
      %v1563 = vpack.c.b16 %v1560, %v1560
      %v1564 = vpack.c.b16 %v1561, %v1561
      %v1565 = vpack.c.b16 %v1562, %v1562
      %1566 = vrot.lane.b32.xlu0 %v1563, 127
      %v1567 = vpop.permute.xlu0 %1566
      %1568 = vrot.lane.b32.xlu0 %v1564, 127
      %v1569 = vpop.permute.xlu0 %1568
      %1570 = vrot.lane.b32.xlu0 %v1565, 127
      %v1571 = vpop.permute.xlu0 %1570
      %v1572 = vsel %vm913, %v1567, %v1569
      %v1573 = vsel %vm913, %v1569, %v1571
      %v1575 = vsel %vm390, %v1557, 0
      %v1578 = vsel %vm394, %v1572, 0
      %v1581 = vsel %vm394, %v1573, 0
      %1583 = vmatprep.subr.bf16.mxu0 %v1581
      %1584 = vmatpush1.bf16.msra.mxu0 %v1578
      %1585 = vmatprep.subr.bf16.mxu0 0
      %1586 = vmatpush1.bf16.msra.mxu0 0
      %1587 = vmatprep.subr.bf16.mxu0 0
      %1588 = vmatpush1.bf16.msra.mxu0 0
      %1589 = vmatprep.subr.bf16.mxu0 0
      %1590 = vmatpush1.bf16.msra.mxu0 0
      %1591 = vmatprep.subr.bf16.mxu0 0
      %1592 = vmatpush1.bf16.msra.mxu0 0
      %1593 = vmatprep.subr.bf16.mxu0 0
      %1594 = vmatpush1.bf16.msra.mxu0 0
      %1595 = vmatprep.subr.bf16.mxu0 0
      %1596 = vmatpush1.bf16.msra.mxu0 0
      %1597 = vmatprep.subr.bf16.mxu0 0
      %1598 = vmatpush1.bf16.msra.mxu0 0
      %1599 = vmatprep.subr.bf16.mxu0 0
      %1600 = vmatpush1.bf16.msra.mxu0 0
      %1601 = vmatprep.subr.bf16.mxu0 0
      %1602 = vmatpush1.bf16.msra.mxu0 0
      %1603 = vmatprep.subr.bf16.mxu0 0
      %1604 = vmatpush1.bf16.msra.mxu0 0
      %1605 = vmatprep.subr.bf16.mxu0 0
      %1606 = vmatpush1.bf16.msra.mxu0 0
      %1607 = vmatprep.subr.bf16.mxu0 0
      %1608 = vmatpush1.bf16.msra.mxu0 0
      %1609 = vmatprep.subr.bf16.mxu0 0
      %1610 = vmatpush1.bf16.msra.mxu0 0
      %1611 = vmatprep.subr.bf16.mxu0 0
      %1612 = vmatpush1.bf16.msra.mxu0 0
      %1613 = vmatprep.subr.bf16.mxu0 0
      %1614 = vmatpush1.bf16.msra.mxu0 0
      %1615 = vmatprep.mubr.bf16.mxu0 0
      %1616 = vmatmul.mubr.bf16.gmra.mrb[0].mxu0 %v1575
      %v1617 = vpop.f32.mrb[0].mxu0
      %v1618 = vadd.f32 0.0, %v1617
      %v1619 = vpop.f32.mrb[0].mxu0
      %v1620 = vadd.f32 0.0, %v1619
      %v1621 = vpop.f32.mrb[0].mxu0
      %v1622 = vpop.f32.mrb[0].mxu0
      %1623 = vdwg.mxu0
      %1624 = vrot.lane.b32.xlu0 %v1149, 120
      %v1625 = vpop.permute.xlu0 %1624
      %v1628 = vunpack.c.l.b16 %v1552
      %v1629 = vunpack.c.h.b16 %v1552
      %v1630 = vunpack.c.l.b16 %v1553
      %v1631 = vpack.c.b16 %v1628, %v1628
      %v1632 = vpack.c.b16 %v1629, %v1629
      %v1633 = vpack.c.b16 %v1630, %v1630
      %1634 = vrot.lane.b32.xlu0 %v1631, 15
      %v1635 = vpop.permute.xlu0 %1634
      %1636 = vrot.lane.b32.xlu0 %v1632, 15
      %v1637 = vpop.permute.xlu0 %1636
      %1638 = vrot.lane.b32.xlu0 %v1633, 15
      %v1639 = vpop.permute.xlu0 %1638
      %v1640 = vsel %vm982, %v1635, %v1637
      %v1641 = vsel %vm982, %v1637, %v1639
      %v1643 = vsel %vm390, %v1625, 0
      %v1646 = vsel %vm394, %v1640, 0
      %v1649 = vsel %vm394, %v1641, 0
      %1651 = vmatprep.subr.bf16.mxu0 %v1649
      %1652 = vmatpush1.bf16.msra.mxu0 %v1646
      %1653 = vmatprep.subr.bf16.mxu0 0
      %1654 = vmatpush1.bf16.msra.mxu0 0
      %1655 = vmatprep.subr.bf16.mxu0 0
      %1656 = vmatpush1.bf16.msra.mxu0 0
      %1657 = vmatprep.subr.bf16.mxu0 0
      %1658 = vmatpush1.bf16.msra.mxu0 0
      %1659 = vmatprep.subr.bf16.mxu0 0
      %1660 = vmatpush1.bf16.msra.mxu0 0
      %1661 = vmatprep.subr.bf16.mxu0 0
      %1662 = vmatpush1.bf16.msra.mxu0 0
      %1663 = vmatprep.subr.bf16.mxu0 0
      %1664 = vmatpush1.bf16.msra.mxu0 0
      %1665 = vmatprep.subr.bf16.mxu0 0
      %1666 = vmatpush1.bf16.msra.mxu0 0
      %1667 = vmatprep.subr.bf16.mxu0 0
      %1668 = vmatpush1.bf16.msra.mxu0 0
      %1669 = vmatprep.subr.bf16.mxu0 0
      %1670 = vmatpush1.bf16.msra.mxu0 0
      %1671 = vmatprep.subr.bf16.mxu0 0
      %1672 = vmatpush1.bf16.msra.mxu0 0
      %1673 = vmatprep.subr.bf16.mxu0 0
      %1674 = vmatpush1.bf16.msra.mxu0 0
      %1675 = vmatprep.subr.bf16.mxu0 0
      %1676 = vmatpush1.bf16.msra.mxu0 0
      %1677 = vmatprep.subr.bf16.mxu0 0
      %1678 = vmatpush1.bf16.msra.mxu0 0
      %1679 = vmatprep.subr.bf16.mxu0 0
      %1680 = vmatpush1.bf16.msra.mxu0 0
      %1681 = vmatprep.subr.bf16.mxu0 0
      %1682 = vmatpush1.bf16.msra.mxu0 0
      %1683 = vmatprep.mubr.bf16.mxu0 0
      %1684 = vmatmul.mubr.bf16.gmra.mrb[0].mxu0 %v1643
      %v1685 = vpop.f32.mrb[0].mxu0
      %v1686 = vadd.f32 %v1618, %v1685
      %v1687 = vpop.f32.mrb[0].mxu0
      %v1688 = vadd.f32 %v1620, %v1687
      %v1689 = vpop.f32.mrb[0].mxu0
      %v1690 = vpop.f32.mrb[0].mxu0
      %1691 = vdwg.mxu0
      %v1692 = vld [vmem:[#allocation2 + $0x4] sm:$0x33]
      %v1693 = vld [vmem:[#allocation2 + $0xc] sm:$0x3]
      %1694 = vrot.lane.b32.xlu0 %v1149, 96
      %v1695 = vpop.permute.xlu0 %1694
      %v1698 = vunpack.c.l.b16 %v1692
      %v1699 = vunpack.c.h.b16 %v1692
      %v1700 = vunpack.c.l.b16 %v1693
      %v1701 = vpack.c.b16 %v1698, %v1698
      %v1702 = vpack.c.b16 %v1699, %v1699
      %v1703 = vpack.c.b16 %v1700, %v1700
      %1704 = vrot.lane.b32.xlu0 %v1701, 111
      %v1705 = vpop.permute.xlu0 %1704
      %1706 = vrot.lane.b32.xlu0 %v1702, 111
      %v1707 = vpop.permute.xlu0 %1706
      %1708 = vrot.lane.b32.xlu0 %v1703, 111
      %v1709 = vpop.permute.xlu0 %1708
      %v1710 = vsel %vm1053, %v1705, %v1707
      %v1711 = vsel %vm1053, %v1707, %v1709
      %v1713 = vsel %vm390, %v1695, 0
      %v1716 = vsel %vm394, %v1710, 0
      %v1719 = vsel %vm394, %v1711, 0
      %1721 = vmatprep.subr.bf16.mxu0 %v1719
      %1722 = vmatpush1.bf16.msra.mxu0 %v1716
      %1723 = vmatprep.subr.bf16.mxu0 0
      %1724 = vmatpush1.bf16.msra.mxu0 0
      %1725 = vmatprep.subr.bf16.mxu0 0
      %1726 = vmatpush1.bf16.msra.mxu0 0
      %1727 = vmatprep.subr.bf16.mxu0 0
      %1728 = vmatpush1.bf16.msra.mxu0 0
      %1729 = vmatprep.subr.bf16.mxu0 0
      %1730 = vmatpush1.bf16.msra.mxu0 0
      %1731 = vmatprep.subr.bf16.mxu0 0
      %1732 = vmatpush1.bf16.msra.mxu0 0
      %1733 = vmatprep.subr.bf16.mxu0 0
      %1734 = vmatpush1.bf16.msra.mxu0 0
      %1735 = vmatprep.subr.bf16.mxu0 0
      %1736 = vmatpush1.bf16.msra.mxu0 0
      %1737 = vmatprep.subr.bf16.mxu0 0
      %1738 = vmatpush1.bf16.msra.mxu0 0
      %1739 = vmatprep.subr.bf16.mxu0 0
      %1740 = vmatpush1.bf16.msra.mxu0 0
      %1741 = vmatprep.subr.bf16.mxu0 0
      %1742 = vmatpush1.bf16.msra.mxu0 0
      %1743 = vmatprep.subr.bf16.mxu0 0
      %1744 = vmatpush1.bf16.msra.mxu0 0
      %1745 = vmatprep.subr.bf16.mxu0 0
      %1746 = vmatpush1.bf16.msra.mxu0 0
      %1747 = vmatprep.subr.bf16.mxu0 0
      %1748 = vmatpush1.bf16.msra.mxu0 0
      %1749 = vmatprep.subr.bf16.mxu0 0
      %1750 = vmatpush1.bf16.msra.mxu0 0
      %1751 = vmatprep.subr.bf16.mxu0 0
      %1752 = vmatpush1.bf16.msra.mxu0 0
      %1753 = vmatprep.mubr.bf16.mxu0 0
      %1754 = vmatmul.mubr.bf16.gmra.mrb[0].mxu0 %v1713
      %v1755 = vpop.f32.mrb[0].mxu0
      %v1756 = vadd.f32 0.0, %v1755
      %v1757 = vpop.f32.mrb[0].mxu0
      %v1758 = vadd.f32 0.0, %v1757
      %v1759 = vpop.f32.mrb[0].mxu0
      %v1760 = vpop.f32.mrb[0].mxu0
      %1761 = vdwg.mxu0
      %v1762 = vadd.f32 %v1686, %v1756
      %v1763 = vadd.f32 %v1688, %v1758
      %v1764 = vmul.f32 %v1762, %v371
      %v1765 = vmul.f32 %v1763, %v372
      %v1766 = vadd.f32 %v1550, %v1764
      %v1767 = vadd.f32 %v1551, %v1765
      %v1768 = vld [vmem:[%s7] sm:$0xf]
      %1770 = vset.pattern.permute.xlu0 0
      %1771 = vperm.xlu0 %1770, %v1768
      %v1772 = vpop.permute.xlu0 %1771
      %v1774 = vmul.f32 %v1766, %v1772
      %v1775 = vmul.f32 %v1767, %v1772
      %v1776 = vld [vmem:[%s8] sm:$0xf]
      %1778 = vset.pattern.permute.xlu0 0
      %1779 = vperm.xlu0 %1778, %v1776
      %v1780 = vpop.permute.xlu0 %1779
      %v1782 = vadd.f32 %v1774, %v1780
      %v1783 = vadd.f32 %v1775, %v1780
      %v1784 = vmax.f32 %v1782, 0.0
      %v1785 = vmax.f32 %v1783, 0.0
      %v1788 = vcombine.low %v1784, %v1785
      %1790 = vst [vmem:[%s332] sm:$0xff] %v1788
      %p1791 = scmp.lt.s32.totalorder %s20, 1
      %s1792 = scalar_select %p1791, %s20, 1
      %s1793 = smul.addr %s1792, 2
      %s1794 = smul.addr %s1793, 4
      %s1795 = scalar_lea.vmem %s9, %s1794
      // Predicated region
      $region57: #{upblock_attention_forward.1} parent=55 // pred_check
        %p1796 = pneg %p232
      $region58: #{upblock_attention_forward.1} parent=55 // pred_check_branch
        %1798 = sbr.rel (%p1796) target = $region60
      $region59: #{upblock_attention_forward.1} parent=55 // pred_region
        _
      $region60: #{upblock_attention_forward.1} parent=55 // pred_fallthru
        _
    $region56: #{upblock_attention_forward.1} parent=5 // pred_fallthru
      _
    %p1799 = scmp.le.s32.totalorder 2, %s15
    // Predicated region
    $region61: #{upblock_attention_forward.1} parent=5 // pred_check
      %p1800 = pneg %p1799
    $region62: #{upblock_attention_forward.1} parent=5 // pred_check_branch
      %1802 = sbr.rel (%p1800) target = $region64
    $region63: #{upblock_attention_forward.1} parent=5 // pred_region
      %s1803 = ssub.s32 %s15, 2
      // Predicated region
      $region65: #{upblock_attention_forward.1} parent=63 // pred_check
        %p1804 = pneg %p238
      $region66: #{upblock_attention_forward.1} parent=63 // pred_check_branch
        %1806 = sbr.rel (%p1804) target = $region68
      $region67: #{upblock_attention_forward.1} parent=63 // pred_region
        %p1807 = scmp.lt.s32.totalorder %s21, 1
        %s1808 = scalar_select %p1807, %s21, 1
        %s1809 = smul.addr %s1808, 2
        %s1810 = smul.addr %s1809, 4
        %s1811 = scalar_lea.vmem %s9, %s1810
      $region68: #{upblock_attention_forward.1} parent=63 // pred_fallthru
        _
    $region64: #{upblock_attention_forward.1} parent=5 // pred_fallthru
      _
  $region6: #{upblock_attention_forward.1} parent=0 // loop_footer
    %s19 = sadd.s32 1, %s15
  $region7: #{upblock_attention_forward.1} parent=0 // loop_footer_branch
    %14 = sbr.rel target = $region3
  $region8: #{upblock_attention_forward.1} parent=0 // loop_exit
    _

</llo_original>
